<compile_context>
chip_gen: v7x
topology: tpu7x:2x2x1
jax: 0.10.0
libtpu: 0.0.40
codegen_flags: <defaults>
</compile_context>

<pallas_src>
import jax
import jax.numpy as jnp
from jax.experimental import pallas as pl
from jax.experimental.pallas import tpu as pltpu

# ---------------- Problem shapes (small, consistent with the module) --------
B = 2      # batch
T = 24     # time steps (fixed by `targets = torch.ones(24)` in forward)
C = 32     # yaml_args['output_size']  (synthetic small value)
K = 15     # yaml_args['cnn_module_kernel']
PAD = (K - 1) // 2
EPS = 1e-5

# ---------------- Padded, lane-dense kernel layout ---------------------------
CP = 128            # channels padded to one lane tile -> unmasked loads/stores
TPAD = 32           # time rows per batch (power of 2, multiple of 8); the zero
                    # rows [T, TPAD) absorb the circular-roll wrap
NP = B * TPAD       # flattened (batch, time) rows inside the kernel: 64
WD_ROWS = 80        # depthwise-tap rows padded so stride-0 broadcast reads of
                    # NP rows starting at any tap k stay in bounds

assert TPAD % 8 == 0 and (TPAD & (TPAD - 1)) == 0
assert TPAD - T >= PAD                       # roll wrap must land on zero rows
assert WD_ROWS % 8 == 0 and WD_ROWS >= (K - 1) + NP


def _preferred_elementwise_dtype():
    """bf16 elementwise chain on v6e/v7x (bf16 VPU/EUP); f32 elsewhere (v5e)."""
    try:
        kind = jax.devices()[0].device_kind.lower()
    except Exception:
        return jnp.float32
    return jnp.bfloat16 if ("v6" in kind or "v7" in kind) else jnp.float32


def _make_kernel(ew_dtype, stride0_taps):
    """Build the kernel body.  `ew_dtype` is the elementwise-chain dtype,
    `stride0_taps` selects stride-0 sublane-broadcast reads of the depthwise
    tap weights (fallback: plain row-select + implicit broadcast)."""

    def kernel(x_ref, w1ab_ref, w2_ref, wd_ref, gamma_ref, beta_ref, out_ref):
        f32 = jnp.float32
        bf16 = jnp.bfloat16

        # ---- pointwise_conv1 + GLU: single fused (NP,CP)@(CP,2CP) MXU pass
        x16 = x_ref[...].astype(bf16)
        y1 = jnp.dot(x16, w1ab_ref[...], preferred_element_type=f32)  # (NP,2CP)
        a = y1[:, :CP].astype(ew_dtype)        # lane-tile aligned split
        b = y1[:, CP:].astype(ew_dtype)
        glu = a * jax.nn.sigmoid(b)            # zero pad rows/lanes stay zero

        # ---- depthwise conv along time (groups=C), zero 'same' padding ------
        # out[t] = sum_k wd[k] * glu[t + k - PAD]: static-shift sublane rolls
        # on the 8-aligned (NP, CP) slab; circular wrap lands in the per-batch
        # zero rows [T, TPAD).
        if stride0_taps:
            def tap(k):  # already sublane-replicated: no in-kernel broadcast
                return wd_ref[pl.ds(k, NP, stride=0), :].astype(ew_dtype)
        else:
            wd_all = wd_ref[...]
            def tap(k):  # (CP,) row; broadcast happens in the multiply
                return wd_all[k].astype(ew_dtype)

        dw = glu * tap(PAD)                    # k == PAD: zero shift
        for k in range(K):                     # static unroll: K-1 XLU rolls
            if k == PAD:
                continue
            dw = dw + pltpu.roll(glu, shift=(PAD - k) % NP, axis=0) * tap(k)

        # ---- BatchNorm1d (training batch stats over the valid B*T rows),
        #      folded into per-channel scale/shift; statistics kept in f32 ----
        dwf = dw.astype(f32)
        row = jax.lax.broadcasted_iota(jnp.int32, (NP, 1), 0)
        valid = ((row & (TPAD - 1)) < T).astype(f32)      # 1.0 on real rows
        inv_n = 1.0 / (B * T)
        mean = jnp.sum(dwf * valid, axis=0, keepdims=True) * inv_n     # (1,CP)
        diff = (dwf - mean) * valid
        var = jnp.sum(diff * diff, axis=0, keepdims=True) * inv_n      # biased
        scale = gamma_ref[...] * jax.lax.rsqrt(var + EPS)
        shift = beta_ref[...] - mean * scale
        bn = (dwf * scale + shift).astype(ew_dtype)

        # ---- Swish, then pointwise_conv2 (pre-transposed weight) ------------
        act = (bn * jax.nn.sigmoid(bn)).astype(bf16)
        y2 = jnp.dot(act, w2_ref[...], preferred_element_type=f32)     # (NP,CP)

        # ---- residual + dropout(p=0); re-read x here (stays resident in
        #      VMEM, 3 vld/cycle) instead of keeping it live across the
        #      depthwise/BN region.  Lane-dense (NP, CP) unmasked store. ------
        out_ref[...] = x_ref[...] + y2

    return kernel


def prepare_params(w1, wd, w2, gamma, beta):
    """One-time host-side packing (padding / transpose / GLU weight fusion).
    Hoisted out of the per-forward path so the 93%-zero pads are never
    re-materialized per call."""
    f32, bf16 = jnp.float32, jnp.bfloat16
    # Fused GLU weight: columns [0,CP) -> 'a' half, [CP,2CP) -> gate half.
    w1ab = jnp.zeros((CP, 2 * CP), bf16)
    w1ab = w1ab.at[:C, :C].set(w1[:C, :].T.astype(bf16))
    w1ab = w1ab.at[:C, CP:CP + C].set(w1[C:, :].T.astype(bf16))
    w2_t = jnp.zeros((CP, CP), bf16).at[:C, :C].set(w2.T.astype(bf16))
    wdp = jnp.zeros((WD_ROWS, CP), f32).at[:K, :C].set(wd)
    gpad = jnp.zeros((1, CP), f32).at[:, :C].set(gamma)
    bpad = jnp.zeros((1, CP), f32).at[:, :C].set(beta)
    return w1ab, w2_t, wdp, gpad, bpad


def make_forward(ew_dtype=jnp.float32, stride0_taps=True):
    """Returns a jitted forward: (x, *packed_params) -> (y (B,T,C), loss)."""
    call = pl.pallas_call(
        _make_kernel(ew_dtype, stride0_taps),
        out_shape=jax.ShapeDtypeStruct((NP, CP), jnp.float32),
        in_specs=[
            pl.BlockSpec((NP, CP), lambda: (0, 0)),
            pl.BlockSpec((CP, 2 * CP), lambda: (0, 0)),
            pl.BlockSpec((CP, CP), lambda: (0, 0)),
            pl.BlockSpec((WD_ROWS, CP), lambda: (0, 0)),
            pl.BlockSpec((1, CP), lambda: (0, 0)),
            pl.BlockSpec((1, CP), lambda: (0, 0)),
        ],
        out_specs=pl.BlockSpec((NP, CP), lambda: (0, 0)),
        # Single instance -> single grid point; no tiling / vmem_limit needed
        # (live data << VMEM on every generation).
    )

    @jax.jit
    def forward(x, w1ab, w2_t, wdp, gpad, bpad):
        # Lane-dense, sublane-aligned input slab (zero padded).
        xpad = (jnp.zeros((B, TPAD, CP), jnp.float32)
                .at[:, :T, :C].set(x).reshape(NP, CP))
        out_flat = call(xpad, w1ab, w2_t, wdp, gpad, bpad)
        y = out_flat.reshape(B, TPAD, CP)[:, :T, :C]
        # NLLLoss(y[0], ones(T)) = -mean_t y[0, t, 1]; computed in the XLA
        # wrapper (trivial index + mean) instead of the kernel epilogue.
        loss = -jnp.mean(y[0, :, 1])
        return y, loss

    return forward


def reference_forward(x, w1, wd, w2, gamma, beta):
    """Pure-JAX f32 reference of the PyTorch module forward."""
    xf = x.reshape(B * T, C)
    y = xf @ w1.T
    g = (y[:, :C] * jax.nn.sigmoid(y[:, C:])).reshape(B, T, C)
    gp = jnp.pad(g, ((0, 0), (PAD, PAD), (0, 0)))
    dw = jnp.zeros((B, T, C), jnp.float32)
    for k in range(K):
        dw = dw + gp[:, k:k + T, :] * wd[k][None, None, :]
    dwf = dw.reshape(B * T, C)
    mean = jnp.mean(dwf, axis=0, keepdims=True)
    var = jnp.mean((dwf - mean) ** 2, axis=0, keepdims=True)
    bn = (dwf - mean) * jax.lax.rsqrt(var + EPS) * gamma + beta
    act = bn * jax.nn.sigmoid(bn)
    y2 = act @ w2.T
    out = x + y2.reshape(B, T, C)
    loss = -jnp.mean(out[0, :, 1])
    return out, loss


def init_params(key):
    """Deterministic synthetic init mirroring the PyTorch layer shapes."""
    k1, k2, k3 = jax.random.split(key, 3)
    # pointwise_conv1: Conv1d(C, 2C, 1, bias=False) -> weight (2C, C, 1)
    w1 = jax.random.uniform(k1, (2 * C, C), jnp.float32,
                            minval=-1.0, maxval=1.0) / jnp.sqrt(C)
    # depthwise_conv: Conv1d(C, C, K, groups=C, bias=False) -> weight (C, 1, K)
    wd_cik = jax.random.uniform(k2, (C, 1, K), jnp.float32,
                                minval=-1.0, maxval=1.0) / jnp.sqrt(K)
    wd = jnp.transpose(wd_cik[:, 0, :], (1, 0))  # (K, C)
    # pointwise_conv2: Conv1d(C, C, 1, bias=False) -> weight (C, C, 1)
    w2 = jax.random.uniform(k3, (C, C), jnp.float32,
                            minval=-1.0, maxval=1.0) / jnp.sqrt(C)
    # BatchNorm1d(C): weight=1, bias=0 (PyTorch default init)
    gamma = jnp.ones((1, C), jnp.float32)
    beta = jnp.zeros((1, C), jnp.float32)
    return w1, wd, w2, gamma, beta


if __name__ == "__main__":
    key = jax.random.PRNGKey(0)
    kx, kp = jax.random.split(key)
    x = jax.random.normal(kx, (B, T, C), jnp.float32)
    w1, wd, w2, gamma, beta = init_params(kp)

    # One-time parameter packing, outside the per-forward path.
    packed = jax.block_until_ready(prepare_params(w1, wd, w2, gamma, beta))

    # Preferred config first (bf16 elementwise on v6e/v7x, stride-0 tap reads);
    # purely defensive fallbacks after it in case a combination does not lower
    # on this chip / jax version.
    ew_pref = _preferred_elementwise_dtype()
    candidates = [(ew_pref, True), (ew_pref, False),
                  (jnp.float32, True), (jnp.float32, False)]
    configs, seen = [], set()
    for c in candidates:
        if c not in seen:
            seen.add(c)
            configs.append(c)

    y = loss = None
    last_err = None
    for ew_dtype, stride0 in configs:
        try:
            fwd = make_forward(ew_dtype, stride0)
            y, loss = jax.block_until_ready(fwd(x, *packed))
            break
        except Exception as e:          # defensive fallback path only
            last_err = e
            y = loss = None
    if y is None:
        raise last_err

    assert y.shape == (B, T, C) and y.dtype == jnp.float32
    assert loss.shape == () and bool(jnp.isfinite(loss))

    # Loose tolerance: bf16 MXU operands (and bf16 elementwise on v6e/v7x)
    # with f32 accumulation/statistics vs the f32 reference.
    y_ref, loss_ref = reference_forward(x, w1, wd, w2, gamma, beta)
    assert bool(jnp.allclose(y, y_ref, atol=1e-1, rtol=1e-1)), "output mismatch"
    assert bool(jnp.allclose(loss, loss_ref, atol=5e-2)), "loss mismatch"

    print("KERNEL_OK")
</pallas_src>

<mosaic_0001>
module attributes {stable_mosaic.version = 11 : i64} {
  func.func @kernel(%arg0: memref<64x128xf32, #tpu.memory_space<vmem>>, %arg1: memref<128x256xbf16, #tpu.memory_space<vmem>>, %arg2: memref<128x128xbf16, #tpu.memory_space<vmem>>, %arg3: memref<80x128xf32, #tpu.memory_space<vmem>>, %arg4: memref<1x128xf32, #tpu.memory_space<vmem>>, %arg5: memref<1x128xf32, #tpu.memory_space<vmem>>, %arg6: memref<64x128xf32, #tpu.memory_space<vmem>>) attributes {dimension_semantics = [], scalar_prefetch = 0 : i64, scratch_operands = 0 : i64, tpu.core_type = #tpu.core_type<tc>} {
    %c0 = arith.constant 0 : index
    %c0_0 = arith.constant 0 : index
    %0 = vector.load %arg0[%c0, %c0_0] : memref<64x128xf32, #tpu.memory_space<vmem>>, vector<64x128xf32>
    %1 = arith.truncf %0 : vector<64x128xf32> to vector<64x128xbf16>
    %c0_1 = arith.constant 0 : index
    %c0_2 = arith.constant 0 : index
    %2 = vector.load %arg1[%c0_1, %c0_2] : memref<128x256xbf16, #tpu.memory_space<vmem>>, vector<128x256xbf16>
    %cst = arith.constant dense<0.000000e+00> : vector<64x256xf32>
    %3 = tpu.matmul %1, %2, %cst {dimension_numbers = #tpu.dot_dimension_numbers<[1], [0], [0], [1], [0, 0, 1, 1], [], []>} : vector<64x128xbf16>, vector<128x256xbf16>, vector<64x256xf32> -> vector<64x256xf32>
    %4 = vector.extract_strided_slice %3 {offsets = [0, 0], sizes = [64, 128], strides = [1, 1]} : vector<64x256xf32> to vector<64x128xf32>
    %5 = vector.extract_strided_slice %3 {offsets = [0, 128], sizes = [64, 128], strides = [1, 1]} : vector<64x256xf32> to vector<64x128xf32>
    %6 = arith.negf %5 : vector<64x128xf32>
    %7 = math.exp %6 : vector<64x128xf32>
    %cst_3 = arith.constant 1.000000e+00 : f32
    %8 = vector.broadcast %cst_3 : f32 to vector<64x128xf32>
    %9 = arith.addf %8, %7 : vector<64x128xf32>
    %10 = arith.divf %8, %9 : vector<64x128xf32>
    %11 = arith.mulf %4, %10 : vector<64x128xf32>
    %c7 = arith.constant 7 : index
    %c0_4 = arith.constant 0 : index
    %12 = tpu.strided_load %arg3[%c7, %c0_4] {strides = array<i32: 0, 1>} : memref<80x128xf32, #tpu.memory_space<vmem>>, vector<64x128xf32>
    %13 = arith.mulf %11, %12 : vector<64x128xf32>
    %c7_i32 = arith.constant 7 : i32
    %14 = tpu.dynamic_rotate %11 by %c7_i32 dim 0 : vector<64x128xf32>, i32 -> vector<64x128xf32>
    %c0_5 = arith.constant 0 : index
    %c0_6 = arith.constant 0 : index
    %15 = tpu.strided_load %arg3[%c0_5, %c0_6] {strides = array<i32: 0, 1>} : memref<80x128xf32, #tpu.memory_space<vmem>>, vector<64x128xf32>
    %16 = arith.mulf %14, %15 : vector<64x128xf32>
    %17 = arith.addf %13, %16 : vector<64x128xf32>
    %c6_i32 = arith.constant 6 : i32
    %18 = tpu.dynamic_rotate %11 by %c6_i32 dim 0 : vector<64x128xf32>, i32 -> vector<64x128xf32>
    %c1 = arith.constant 1 : index
    %c0_7 = arith.constant 0 : index
    %19 = tpu.strided_load %arg3[%c1, %c0_7] {strides = array<i32: 0, 1>} : memref<80x128xf32, #tpu.memory_space<vmem>>, vector<64x128xf32>
    %20 = arith.mulf %18, %19 : vector<64x128xf32>
    %21 = arith.addf %17, %20 : vector<64x128xf32>
    %c5_i32 = arith.constant 5 : i32
    %22 = tpu.dynamic_rotate %11 by %c5_i32 dim 0 : vector<64x128xf32>, i32 -> vector<64x128xf32>
    %c2 = arith.constant 2 : index
    %c0_8 = arith.constant 0 : index
    %23 = tpu.strided_load %arg3[%c2, %c0_8] {strides = array<i32: 0, 1>} : memref<80x128xf32, #tpu.memory_space<vmem>>, vector<64x128xf32>
    %24 = arith.mulf %22, %23 : vector<64x128xf32>
    %25 = arith.addf %21, %24 : vector<64x128xf32>
    %c4_i32 = arith.constant 4 : i32
    %26 = tpu.dynamic_rotate %11 by %c4_i32 dim 0 : vector<64x128xf32>, i32 -> vector<64x128xf32>
    %c3 = arith.constant 3 : index
    %c0_9 = arith.constant 0 : index
    %27 = tpu.strided_load %arg3[%c3, %c0_9] {strides = array<i32: 0, 1>} : memref<80x128xf32, #tpu.memory_space<vmem>>, vector<64x128xf32>
    %28 = arith.mulf %26, %27 : vector<64x128xf32>
    %29 = arith.addf %25, %28 : vector<64x128xf32>
    %c3_i32 = arith.constant 3 : i32
    %30 = tpu.dynamic_rotate %11 by %c3_i32 dim 0 : vector<64x128xf32>, i32 -> vector<64x128xf32>
    %c4 = arith.constant 4 : index
    %c0_10 = arith.constant 0 : index
    %31 = tpu.strided_load %arg3[%c4, %c0_10] {strides = array<i32: 0, 1>} : memref<80x128xf32, #tpu.memory_space<vmem>>, vector<64x128xf32>
    %32 = arith.mulf %30, %31 : vector<64x128xf32>
    %33 = arith.addf %29, %32 : vector<64x128xf32>
    %c2_i32 = arith.constant 2 : i32
    %34 = tpu.dynamic_rotate %11 by %c2_i32 dim 0 : vector<64x128xf32>, i32 -> vector<64x128xf32>
    %c5 = arith.constant 5 : index
    %c0_11 = arith.constant 0 : index
    %35 = tpu.strided_load %arg3[%c5, %c0_11] {strides = array<i32: 0, 1>} : memref<80x128xf32, #tpu.memory_space<vmem>>, vector<64x128xf32>
    %36 = arith.mulf %34, %35 : vector<64x128xf32>
    %37 = arith.addf %33, %36 : vector<64x128xf32>
    %c1_i32 = arith.constant 1 : i32
    %38 = tpu.dynamic_rotate %11 by %c1_i32 dim 0 : vector<64x128xf32>, i32 -> vector<64x128xf32>
    %c6 = arith.constant 6 : index
    %c0_12 = arith.constant 0 : index
    %39 = tpu.strided_load %arg3[%c6, %c0_12] {strides = array<i32: 0, 1>} : memref<80x128xf32, #tpu.memory_space<vmem>>, vector<64x128xf32>
    %40 = arith.mulf %38, %39 : vector<64x128xf32>
    %41 = arith.addf %37, %40 : vector<64x128xf32>
    %c63_i32 = arith.constant 63 : i32
    %42 = tpu.dynamic_rotate %11 by %c63_i32 dim 0 : vector<64x128xf32>, i32 -> vector<64x128xf32>
    %c8 = arith.constant 8 : index
    %c0_13 = arith.constant 0 : index
    %43 = tpu.strided_load %arg3[%c8, %c0_13] {strides = array<i32: 0, 1>} : memref<80x128xf32, #tpu.memory_space<vmem>>, vector<64x128xf32>
    %44 = arith.mulf %42, %43 : vector<64x128xf32>
    %45 = arith.addf %41, %44 : vector<64x128xf32>
    %c62_i32 = arith.constant 62 : i32
    %46 = tpu.dynamic_rotate %11 by %c62_i32 dim 0 : vector<64x128xf32>, i32 -> vector<64x128xf32>
    %c9 = arith.constant 9 : index
    %c0_14 = arith.constant 0 : index
    %47 = tpu.strided_load %arg3[%c9, %c0_14] {strides = array<i32: 0, 1>} : memref<80x128xf32, #tpu.memory_space<vmem>>, vector<64x128xf32>
    %48 = arith.mulf %46, %47 : vector<64x128xf32>
    %49 = arith.addf %45, %48 : vector<64x128xf32>
    %c61_i32 = arith.constant 61 : i32
    %50 = tpu.dynamic_rotate %11 by %c61_i32 dim 0 : vector<64x128xf32>, i32 -> vector<64x128xf32>
    %c10 = arith.constant 10 : index
    %c0_15 = arith.constant 0 : index
    %51 = tpu.strided_load %arg3[%c10, %c0_15] {strides = array<i32: 0, 1>} : memref<80x128xf32, #tpu.memory_space<vmem>>, vector<64x128xf32>
    %52 = arith.mulf %50, %51 : vector<64x128xf32>
    %53 = arith.addf %49, %52 : vector<64x128xf32>
    %c60_i32 = arith.constant 60 : i32
    %54 = tpu.dynamic_rotate %11 by %c60_i32 dim 0 : vector<64x128xf32>, i32 -> vector<64x128xf32>
    %c11 = arith.constant 11 : index
    %c0_16 = arith.constant 0 : index
    %55 = tpu.strided_load %arg3[%c11, %c0_16] {strides = array<i32: 0, 1>} : memref<80x128xf32, #tpu.memory_space<vmem>>, vector<64x128xf32>
    %56 = arith.mulf %54, %55 : vector<64x128xf32>
    %57 = arith.addf %53, %56 : vector<64x128xf32>
    %c59_i32 = arith.constant 59 : i32
    %58 = tpu.dynamic_rotate %11 by %c59_i32 dim 0 : vector<64x128xf32>, i32 -> vector<64x128xf32>
    %c12 = arith.constant 12 : index
    %c0_17 = arith.constant 0 : index
    %59 = tpu.strided_load %arg3[%c12, %c0_17] {strides = array<i32: 0, 1>} : memref<80x128xf32, #tpu.memory_space<vmem>>, vector<64x128xf32>
    %60 = arith.mulf %58, %59 : vector<64x128xf32>
    %61 = arith.addf %57, %60 : vector<64x128xf32>
    %c58_i32 = arith.constant 58 : i32
    %62 = tpu.dynamic_rotate %11 by %c58_i32 dim 0 : vector<64x128xf32>, i32 -> vector<64x128xf32>
    %c13 = arith.constant 13 : index
    %c0_18 = arith.constant 0 : index
    %63 = tpu.strided_load %arg3[%c13, %c0_18] {strides = array<i32: 0, 1>} : memref<80x128xf32, #tpu.memory_space<vmem>>, vector<64x128xf32>
    %64 = arith.mulf %62, %63 : vector<64x128xf32>
    %65 = arith.addf %61, %64 : vector<64x128xf32>
    %c57_i32 = arith.constant 57 : i32
    %66 = tpu.dynamic_rotate %11 by %c57_i32 dim 0 : vector<64x128xf32>, i32 -> vector<64x128xf32>
    %c14 = arith.constant 14 : index
    %c0_19 = arith.constant 0 : index
    %67 = tpu.strided_load %arg3[%c14, %c0_19] {strides = array<i32: 0, 1>} : memref<80x128xf32, #tpu.memory_space<vmem>>, vector<64x128xf32>
    %68 = arith.mulf %66, %67 : vector<64x128xf32>
    %69 = arith.addf %65, %68 : vector<64x128xf32>
    %70 = tpu.iota {dimensions = array<i32: 0>} : vector<64x1xi32>
    %c31_i32 = arith.constant 31 : i32
    %71 = vector.broadcast %c31_i32 : i32 to vector<64x1xi32>
    %72 = arith.andi %70, %71 : vector<64x1xi32>
    %c24_i32 = arith.constant 24 : i32
    %73 = vector.broadcast %c24_i32 : i32 to vector<64x1xi32>
    %74 = arith.cmpi slt, %72, %73 : vector<64x1xi32>
    %75 = arith.extui %74 : vector<64x1xi1> to vector<64x1xi32>
    %76 = arith.sitofp %75 : vector<64x1xi32> to vector<64x1xf32>
    %77 = vector.broadcast %76 : vector<64x1xf32> to vector<64x128xf32>
    %78 = arith.mulf %69, %77 : vector<64x128xf32>
    %cst_20 = arith.constant dense<0.000000e+00> : vector<128xf32>
    %79 = vector.multi_reduction <add>, %78, %cst_20 [0] : vector<64x128xf32> to vector<128xf32>
    %80 = vector.shape_cast %79 : vector<128xf32> to vector<1x128xf32>
    %cst_21 = arith.constant 0.020833334 : f32
    %81 = vector.broadcast %cst_21 : f32 to vector<1x128xf32>
    %82 = arith.mulf %80, %81 : vector<1x128xf32>
    %83 = vector.broadcast %82 : vector<1x128xf32> to vector<64x128xf32>
    %84 = arith.subf %69, %83 : vector<64x128xf32>
    %85 = vector.broadcast %76 : vector<64x1xf32> to vector<64x128xf32>
    %86 = arith.mulf %84, %85 : vector<64x128xf32>
    %87 = arith.mulf %86, %86 : vector<64x128xf32>
    %cst_22 = arith.constant dense<0.000000e+00> : vector<128xf32>
    %88 = vector.multi_reduction <add>, %87, %cst_22 [0] : vector<64x128xf32> to vector<128xf32>
    %89 = vector.shape_cast %88 : vector<128xf32> to vector<1x128xf32>
    %cst_23 = arith.constant 0.020833334 : f32
    %90 = vector.broadcast %cst_23 : f32 to vector<1x128xf32>
    %91 = arith.mulf %89, %90 : vector<1x128xf32>
    %c0_24 = arith.constant 0 : index
    %c0_25 = arith.constant 0 : index
    %92 = vector.load %arg4[%c0_24, %c0_25] : memref<1x128xf32, #tpu.memory_space<vmem>>, vector<1x128xf32>
    %cst_26 = arith.constant 9.99999974E-6 : f32
    %93 = vector.broadcast %cst_26 : f32 to vector<1x128xf32>
    %94 = arith.addf %91, %93 : vector<1x128xf32>
    %95 = math.rsqrt %94 : vector<1x128xf32>
    %96 = arith.mulf %92, %95 : vector<1x128xf32>
    %c0_27 = arith.constant 0 : index
    %c0_28 = arith.constant 0 : index
    %97 = vector.load %arg5[%c0_27, %c0_28] : memref<1x128xf32, #tpu.memory_space<vmem>>, vector<1x128xf32>
    %98 = arith.mulf %82, %96 : vector<1x128xf32>
    %99 = arith.subf %97, %98 : vector<1x128xf32>
    %100 = vector.broadcast %96 : vector<1x128xf32> to vector<64x128xf32>
    %101 = arith.mulf %69, %100 : vector<64x128xf32>
    %102 = vector.broadcast %99 : vector<1x128xf32> to vector<64x128xf32>
    %103 = arith.addf %101, %102 : vector<64x128xf32>
    %104 = arith.negf %103 : vector<64x128xf32>
    %105 = math.exp %104 : vector<64x128xf32>
    %cst_29 = arith.constant 1.000000e+00 : f32
    %106 = vector.broadcast %cst_29 : f32 to vector<64x128xf32>
    %107 = arith.addf %106, %105 : vector<64x128xf32>
    %108 = arith.divf %106, %107 : vector<64x128xf32>
    %109 = arith.mulf %103, %108 : vector<64x128xf32>
    %110 = arith.truncf %109 : vector<64x128xf32> to vector<64x128xbf16>
    %c0_30 = arith.constant 0 : index
    %c0_31 = arith.constant 0 : index
    %111 = vector.load %arg2[%c0_30, %c0_31] : memref<128x128xbf16, #tpu.memory_space<vmem>>, vector<128x128xbf16>
    %cst_32 = arith.constant dense<0.000000e+00> : vector<64x128xf32>
    %112 = tpu.matmul %110, %111, %cst_32 {dimension_numbers = #tpu.dot_dimension_numbers<[1], [0], [0], [1], [0, 0, 1, 1], [], []>} : vector<64x128xbf16>, vector<128x128xbf16>, vector<64x128xf32> -> vector<64x128xf32>
    %c0_33 = arith.constant 0 : index
    %c0_34 = arith.constant 0 : index
    %113 = vector.load %arg0[%c0_33, %c0_34] : memref<64x128xf32, #tpu.memory_space<vmem>>, vector<64x128xf32>
    %114 = arith.addf %113, %112 : vector<64x128xf32>
    %c0_35 = arith.constant 0 : index
    %c0_36 = arith.constant 0 : index
    %115 = vector.load %arg6[%c0_35, %c0_36] : memref<64x128xf32, #tpu.memory_space<vmem>>, vector<64x128xf32>
    tpu.vector_store %arg6[%c0_35, %c0_36], %114 {strides = array<i32>} : memref<64x128xf32, #tpu.memory_space<vmem>>, vector<64x128xf32>,
    return
  }
}

module attributes {stable_mosaic.version = 11 : i64} {
  func.func @kernel(%arg0: memref<64x128xf32, #tpu.memory_space<vmem>>, %arg1: memref<128x256xbf16, #tpu.memory_space<vmem>>, %arg2: memref<128x128xbf16, #tpu.memory_space<vmem>>, %arg3: memref<80x128xf32, #tpu.memory_space<vmem>>, %arg4: memref<1x128xf32, #tpu.memory_space<vmem>>, %arg5: memref<1x128xf32, #tpu.memory_space<vmem>>, %arg6: memref<64x128xf32, #tpu.memory_space<vmem>>) attributes {dimension_semantics = [], scalar_prefetch = 0 : i64, scratch_operands = 0 : i64, tpu.core_type = #tpu.core_type<tc>} {
    %c0 = arith.constant 0 : index
    %c0_0 = arith.constant 0 : index
    %0 = vector.load %arg0[%c0, %c0_0] : memref<64x128xf32, #tpu.memory_space<vmem>>, vector<64x128xf32>
    %1 = arith.truncf %0 : vector<64x128xf32> to vector<64x128xbf16>
    %c0_1 = arith.constant 0 : index
    %c0_2 = arith.constant 0 : index
    %2 = vector.load %arg1[%c0_1, %c0_2] : memref<128x256xbf16, #tpu.memory_space<vmem>>, vector<128x256xbf16>
    %cst = arith.constant dense<0.000000e+00> : vector<64x256xf32>
    %3 = tpu.matmul %1, %2, %cst {dimension_numbers = #tpu.dot_dimension_numbers<[1], [0], [0], [1], [0, 0, 1, 1], [], []>} : vector<64x128xbf16>, vector<128x256xbf16>, vector<64x256xf32> -> vector<64x256xf32>
    %4 = vector.extract_strided_slice %3 {offsets = [0, 0], sizes = [64, 128], strides = [1, 1]} : vector<64x256xf32> to vector<64x128xf32>
    %5 = vector.extract_strided_slice %3 {offsets = [0, 128], sizes = [64, 128], strides = [1, 1]} : vector<64x256xf32> to vector<64x128xf32>
    %6 = arith.negf %5 : vector<64x128xf32>
    %7 = math.exp %6 : vector<64x128xf32>
    %cst_3 = arith.constant 1.000000e+00 : f32
    %8 = vector.broadcast %cst_3 : f32 to vector<64x128xf32>
    %9 = arith.addf %8, %7 : vector<64x128xf32>
    %10 = arith.divf %8, %9 : vector<64x128xf32>
    %11 = arith.mulf %4, %10 : vector<64x128xf32>
    %c0_4 = arith.constant 0 : index
    %c0_5 = arith.constant 0 : index
    %12 = vector.load %arg3[%c0_4, %c0_5] : memref<80x128xf32, #tpu.memory_space<vmem>>, vector<80x128xf32>
    %13 = vector.extract_strided_slice %12 {offsets = [7, 0], sizes = [1, 128], strides = [1, 1]} : vector<80x128xf32> to vector<1x128xf32>
    %14 = vector.shape_cast %13 : vector<1x128xf32> to vector<128xf32>
    %15 = vector.shape_cast %14 : vector<128xf32> to vector<1x128xf32>
    %16 = vector.broadcast %15 : vector<1x128xf32> to vector<64x128xf32>
    %17 = arith.mulf %11, %16 : vector<64x128xf32>
    %c7_i32 = arith.constant 7 : i32
    %18 = tpu.dynamic_rotate %11 by %c7_i32 dim 0 : vector<64x128xf32>, i32 -> vector<64x128xf32>
    %19 = vector.extract_strided_slice %12 {offsets = [0, 0], sizes = [1, 128], strides = [1, 1]} : vector<80x128xf32> to vector<1x128xf32>
    %20 = vector.shape_cast %19 : vector<1x128xf32> to vector<128xf32>
    %21 = vector.shape_cast %20 : vector<128xf32> to vector<1x128xf32>
    %22 = vector.broadcast %21 : vector<1x128xf32> to vector<64x128xf32>
    %23 = arith.mulf %18, %22 : vector<64x128xf32>
    %24 = arith.addf %17, %23 : vector<64x128xf32>
    %c6_i32 = arith.constant 6 : i32
    %25 = tpu.dynamic_rotate %11 by %c6_i32 dim 0 : vector<64x128xf32>, i32 -> vector<64x128xf32>
    %26 = vector.extract_strided_slice %12 {offsets = [1, 0], sizes = [1, 128], strides = [1, 1]} : vector<80x128xf32> to vector<1x128xf32>
    %27 = vector.shape_cast %26 : vector<1x128xf32> to vector<128xf32>
    %28 = vector.shape_cast %27 : vector<128xf32> to vector<1x128xf32>
    %29 = vector.broadcast %28 : vector<1x128xf32> to vector<64x128xf32>
    %30 = arith.mulf %25, %29 : vector<64x128xf32>
    %31 = arith.addf %24, %30 : vector<64x128xf32>
    %c5_i32 = arith.constant 5 : i32
    %32 = tpu.dynamic_rotate %11 by %c5_i32 dim 0 : vector<64x128xf32>, i32 -> vector<64x128xf32>
    %33 = vector.extract_strided_slice %12 {offsets = [2, 0], sizes = [1, 128], strides = [1, 1]} : vector<80x128xf32> to vector<1x128xf32>
    %34 = vector.shape_cast %33 : vector<1x128xf32> to vector<128xf32>
    %35 = vector.shape_cast %34 : vector<128xf32> to vector<1x128xf32>
    %36 = vector.broadcast %35 : vector<1x128xf32> to vector<64x128xf32>
    %37 = arith.mulf %32, %36 : vector<64x128xf32>
    %38 = arith.addf %31, %37 : vector<64x128xf32>
    %c4_i32 = arith.constant 4 : i32
    %39 = tpu.dynamic_rotate %11 by %c4_i32 dim 0 : vector<64x128xf32>, i32 -> vector<64x128xf32>
    %40 = vector.extract_strided_slice %12 {offsets = [3, 0], sizes = [1, 128], strides = [1, 1]} : vector<80x128xf32> to vector<1x128xf32>
    %41 = vector.shape_cast %40 : vector<1x128xf32> to vector<128xf32>
    %42 = vector.shape_cast %41 : vector<128xf32> to vector<1x128xf32>
    %43 = vector.broadcast %42 : vector<1x128xf32> to vector<64x128xf32>
    %44 = arith.mulf %39, %43 : vector<64x128xf32>
    %45 = arith.addf %38, %44 : vector<64x128xf32>
    %c3_i32 = arith.constant 3 : i32
    %46 = tpu.dynamic_rotate %11 by %c3_i32 dim 0 : vector<64x128xf32>, i32 -> vector<64x128xf32>
    %47 = vector.extract_strided_slice %12 {offsets = [4, 0], sizes = [1, 128], strides = [1, 1]} : vector<80x128xf32> to vector<1x128xf32>
    %48 = vector.shape_cast %47 : vector<1x128xf32> to vector<128xf32>
    %49 = vector.shape_cast %48 : vector<128xf32> to vector<1x128xf32>
    %50 = vector.broadcast %49 : vector<1x128xf32> to vector<64x128xf32>
    %51 = arith.mulf %46, %50 : vector<64x128xf32>
    %52 = arith.addf %45, %51 : vector<64x128xf32>
    %c2_i32 = arith.constant 2 : i32
    %53 = tpu.dynamic_rotate %11 by %c2_i32 dim 0 : vector<64x128xf32>, i32 -> vector<64x128xf32>
    %54 = vector.extract_strided_slice %12 {offsets = [5, 0], sizes = [1, 128], strides = [1, 1]} : vector<80x128xf32> to vector<1x128xf32>
    %55 = vector.shape_cast %54 : vector<1x128xf32> to vector<128xf32>
    %56 = vector.shape_cast %55 : vector<128xf32> to vector<1x128xf32>
    %57 = vector.broadcast %56 : vector<1x128xf32> to vector<64x128xf32>
    %58 = arith.mulf %53, %57 : vector<64x128xf32>
    %59 = arith.addf %52, %58 : vector<64x128xf32>
    %c1_i32 = arith.constant 1 : i32
    %60 = tpu.dynamic_rotate %11 by %c1_i32 dim 0 : vector<64x128xf32>, i32 -> vector<64x128xf32>
    %61 = vector.extract_strided_slice %12 {offsets = [6, 0], sizes = [1, 128], strides = [1, 1]} : vector<80x128xf32> to vector<1x128xf32>
    %62 = vector.shape_cast %61 : vector<1x128xf32> to vector<128xf32>
    %63 = vector.shape_cast %62 : vector<128xf32> to vector<1x128xf32>
    %64 = vector.broadcast %63 : vector<1x128xf32> to vector<64x128xf32>
    %65 = arith.mulf %60, %64 : vector<64x128xf32>
    %66 = arith.addf %59, %65 : vector<64x128xf32>
    %c63_i32 = arith.constant 63 : i32
    %67 = tpu.dynamic_rotate %11 by %c63_i32 dim 0 : vector<64x128xf32>, i32 -> vector<64x128xf32>
    %68 = vector.extract_strided_slice %12 {offsets = [8, 0], sizes = [1, 128], strides = [1, 1]} : vector<80x128xf32> to vector<1x128xf32>
    %69 = vector.shape_cast %68 : vector<1x128xf32> to vector<128xf32>
    %70 = vector.shape_cast %69 : vector<128xf32> to vector<1x128xf32>
    %71 = vector.broadcast %70 : vector<1x128xf32> to vector<64x128xf32>
    %72 = arith.mulf %67, %71 : vector<64x128xf32>
    %73 = arith.addf %66, %72 : vector<64x128xf32>
    %c62_i32 = arith.constant 62 : i32
    %74 = tpu.dynamic_rotate %11 by %c62_i32 dim 0 : vector<64x128xf32>, i32 -> vector<64x128xf32>
    %75 = vector.extract_strided_slice %12 {offsets = [9, 0], sizes = [1, 128], strides = [1, 1]} : vector<80x128xf32> to vector<1x128xf32>
    %76 = vector.shape_cast %75 : vector<1x128xf32> to vector<128xf32>
    %77 = vector.shape_cast %76 : vector<128xf32> to vector<1x128xf32>
    %78 = vector.broadcast %77 : vector<1x128xf32> to vector<64x128xf32>
    %79 = arith.mulf %74, %78 : vector<64x128xf32>
    %80 = arith.addf %73, %79 : vector<64x128xf32>
    %c61_i32 = arith.constant 61 : i32
    %81 = tpu.dynamic_rotate %11 by %c61_i32 dim 0 : vector<64x128xf32>, i32 -> vector<64x128xf32>
    %82 = vector.extract_strided_slice %12 {offsets = [10, 0], sizes = [1, 128], strides = [1, 1]} : vector<80x128xf32> to vector<1x128xf32>
    %83 = vector.shape_cast %82 : vector<1x128xf32> to vector<128xf32>
    %84 = vector.shape_cast %83 : vector<128xf32> to vector<1x128xf32>
    %85 = vector.broadcast %84 : vector<1x128xf32> to vector<64x128xf32>
    %86 = arith.mulf %81, %85 : vector<64x128xf32>
    %87 = arith.addf %80, %86 : vector<64x128xf32>
    %c60_i32 = arith.constant 60 : i32
    %88 = tpu.dynamic_rotate %11 by %c60_i32 dim 0 : vector<64x128xf32>, i32 -> vector<64x128xf32>
    %89 = vector.extract_strided_slice %12 {offsets = [11, 0], sizes = [1, 128], strides = [1, 1]} : vector<80x128xf32> to vector<1x128xf32>
    %90 = vector.shape_cast %89 : vector<1x128xf32> to vector<128xf32>
    %91 = vector.shape_cast %90 : vector<128xf32> to vector<1x128xf32>
    %92 = vector.broadcast %91 : vector<1x128xf32> to vector<64x128xf32>
    %93 = arith.mulf %88, %92 : vector<64x128xf32>
    %94 = arith.addf %87, %93 : vector<64x128xf32>
    %c59_i32 = arith.constant 59 : i32
    %95 = tpu.dynamic_rotate %11 by %c59_i32 dim 0 : vector<64x128xf32>, i32 -> vector<64x128xf32>
    %96 = vector.extract_strided_slice %12 {offsets = [12, 0], sizes = [1, 128], strides = [1, 1]} : vector<80x128xf32> to vector<1x128xf32>
    %97 = vector.shape_cast %96 : vector<1x128xf32> to vector<128xf32>
    %98 = vector.shape_cast %97 : vector<128xf32> to vector<1x128xf32>
    %99 = vector.broadcast %98 : vector<1x128xf32> to vector<64x128xf32>
    %100 = arith.mulf %95, %99 : vector<64x128xf32>
    %101 = arith.addf %94, %100 : vector<64x128xf32>
    %c58_i32 = arith.constant 58 : i32
    %102 = tpu.dynamic_rotate %11 by %c58_i32 dim 0 : vector<64x128xf32>, i32 -> vector<64x128xf32>
    %103 = vector.extract_strided_slice %12 {offsets = [13, 0], sizes = [1, 128], strides = [1, 1]} : vector<80x128xf32> to vector<1x128xf32>
    %104 = vector.shape_cast %103 : vector<1x128xf32> to vector<128xf32>
    %105 = vector.shape_cast %104 : vector<128xf32> to vector<1x128xf32>
    %106 = vector.broadcast %105 : vector<1x128xf32> to vector<64x128xf32>
    %107 = arith.mulf %102, %106 : vector<64x128xf32>
    %108 = arith.addf %101, %107 : vector<64x128xf32>
    %c57_i32 = arith.constant 57 : i32
    %109 = tpu.dynamic_rotate %11 by %c57_i32 dim 0 : vector<64x128xf32>, i32 -> vector<64x128xf32>
    %110 = vector.extract_strided_slice %12 {offsets = [14, 0], sizes = [1, 128], strides = [1, 1]} : vector<80x128xf32> to vector<1x128xf32>
    %111 = vector.shape_cast %110 : vector<1x128xf32> to vector<128xf32>
    %112 = vector.shape_cast %111 : vector<128xf32> to vector<1x128xf32>
    %113 = vector.broadcast %112 : vector<1x128xf32> to vector<64x128xf32>
    %114 = arith.mulf %109, %113 : vector<64x128xf32>
    %115 = arith.addf %108, %114 : vector<64x128xf32>
    %116 = tpu.iota {dimensions = array<i32: 0>} : vector<64x1xi32>
    %c31_i32 = arith.constant 31 : i32
    %117 = vector.broadcast %c31_i32 : i32 to vector<64x1xi32>
    %118 = arith.andi %116, %117 : vector<64x1xi32>
    %c24_i32 = arith.constant 24 : i32
    %119 = vector.broadcast %c24_i32 : i32 to vector<64x1xi32>
    %120 = arith.cmpi slt, %118, %119 : vector<64x1xi32>
    %121 = arith.extui %120 : vector<64x1xi1> to vector<64x1xi32>
    %122 = arith.sitofp %121 : vector<64x1xi32> to vector<64x1xf32>
    %123 = vector.broadcast %122 : vector<64x1xf32> to vector<64x128xf32>
    %124 = arith.mulf %115, %123 : vector<64x128xf32>
    %cst_6 = arith.constant dense<0.000000e+00> : vector<128xf32>
    %125 = vector.multi_reduction <add>, %124, %cst_6 [0] : vector<64x128xf32> to vector<128xf32>
    %126 = vector.shape_cast %125 : vector<128xf32> to vector<1x128xf32>
    %cst_7 = arith.constant 0.020833334 : f32
    %127 = vector.broadcast %cst_7 : f32 to vector<1x128xf32>
    %128 = arith.mulf %126, %127 : vector<1x128xf32>
    %129 = vector.broadcast %128 : vector<1x128xf32> to vector<64x128xf32>
    %130 = arith.subf %115, %129 : vector<64x128xf32>
    %131 = vector.broadcast %122 : vector<64x1xf32> to vector<64x128xf32>
    %132 = arith.mulf %130, %131 : vector<64x128xf32>
    %133 = arith.mulf %132, %132 : vector<64x128xf32>
    %cst_8 = arith.constant dense<0.000000e+00> : vector<128xf32>
    %134 = vector.multi_reduction <add>, %133, %cst_8 [0] : vector<64x128xf32> to vector<128xf32>
    %135 = vector.shape_cast %134 : vector<128xf32> to vector<1x128xf32>
    %cst_9 = arith.constant 0.020833334 : f32
    %136 = vector.broadcast %cst_9 : f32 to vector<1x128xf32>
    %137 = arith.mulf %135, %136 : vector<1x128xf32>
    %c0_10 = arith.constant 0 : index
    %c0_11 = arith.constant 0 : index
    %138 = vector.load %arg4[%c0_10, %c0_11] : memref<1x128xf32, #tpu.memory_space<vmem>>, vector<1x128xf32>
    %cst_12 = arith.constant 9.99999974E-6 : f32
    %139 = vector.broadcast %cst_12 : f32 to vector<1x128xf32>
    %140 = arith.addf %137, %139 : vector<1x128xf32>
    %141 = math.rsqrt %140 : vector<1x128xf32>
    %142 = arith.mulf %138, %141 : vector<1x128xf32>
    %c0_13 = arith.constant 0 : index
    %c0_14 = arith.constant 0 : index
    %143 = vector.load %arg5[%c0_13, %c0_14] : memref<1x128xf32, #tpu.memory_space<vmem>>, vector<1x128xf32>
    %144 = arith.mulf %128, %142 : vector<1x128xf32>
    %145 = arith.subf %143, %144 : vector<1x128xf32>
    %146 = vector.broadcast %142 : vector<1x128xf32> to vector<64x128xf32>
    %147 = arith.mulf %115, %146 : vector<64x128xf32>
    %148 = vector.broadcast %145 : vector<1x128xf32> to vector<64x128xf32>
    %149 = arith.addf %147, %148 : vector<64x128xf32>
    %150 = arith.negf %149 : vector<64x128xf32>
    %151 = math.exp %150 : vector<64x128xf32>
    %cst_15 = arith.constant 1.000000e+00 : f32
    %152 = vector.broadcast %cst_15 : f32 to vector<64x128xf32>
    %153 = arith.addf %152, %151 : vector<64x128xf32>
    %154 = arith.divf %152, %153 : vector<64x128xf32>
    %155 = arith.mulf %149, %154 : vector<64x128xf32>
    %156 = arith.truncf %155 : vector<64x128xf32> to vector<64x128xbf16>
    %c0_16 = arith.constant 0 : index
    %c0_17 = arith.constant 0 : index
    %157 = vector.load %arg2[%c0_16, %c0_17] : memref<128x128xbf16, #tpu.memory_space<vmem>>, vector<128x128xbf16>
    %cst_18 = arith.constant dense<0.000000e+00> : vector<64x128xf32>
    %158 = tpu.matmul %156, %157, %cst_18 {dimension_numbers = #tpu.dot_dimension_numbers<[1], [0], [0], [1], [0, 0, 1, 1], [], []>} : vector<64x128xbf16>, vector<128x128xbf16>, vector<64x128xf32> -> vector<64x128xf32>
    %c0_19 = arith.constant 0 : index
    %c0_20 = arith.constant 0 : index
    %159 = vector.load %arg0[%c0_19, %c0_20] : memref<64x128xf32, #tpu.memory_space<vmem>>, vector<64x128xf32>
    %160 = arith.addf %159, %158 : vector<64x128xf32>
    %c0_21 = arith.constant 0 : index
    %c0_22 = arith.constant 0 : index
    %161 = vector.load %arg6[%c0_21, %c0_22] : memref<64x128xf32, #tpu.memory_space<vmem>>, vector<64x128xf32>
    tpu.vector_store %arg6[%c0_21, %c0_22], %160 {strides = array<i32>} : memref<64x128xf32, #tpu.memory_space<vmem>>, vector<64x128xf32>,
    return
  }
}

</mosaic_0001>

<llo_original>
// kernel: forward.1
$region0: #{forward.1}
  #allocation0 [shape = 'u32[]', space=smem, size = 0x4, offset = 0x4, fixed_abs, tag = 'smem constant byte address 0x4 - core index']
  #allocation1 [shape = 'u32[144,128]{1,0:T(1,128)}', space=vmem, size = 0x12000, scoped, tag = 'internal scratch']
  %s0 = inlined_call_operand.vmem [shape: f32[64,128], index: 0, kind: input, shape index: {}]
  %s1 = inlined_call_operand.hbm [shape: bf16[128,256], index: 1, kind: input, shape index: {}]
  %s2 = inlined_call_operand.hbm [shape: bf16[128,128], index: 2, kind: input, shape index: {}]
  %s3 = inlined_call_operand.vmem [shape: f32[80,128], index: 3, kind: input, shape index: {}]
  %s4 = inlined_call_operand.vmem [shape: f32[1,128], index: 4, kind: input, shape index: {}]
  %s5 = inlined_call_operand.vmem [shape: f32[1,128], index: 5, kind: input, shape index: {}]
  %s6 = inlined_call_operand.vmem [shape: f32[64,128], index: 6, kind: output, shape index: {}]
  %s7 = sld [smem:[#allocation0]]
  $region42: #{forward.1} parent=0
    _
  %s9 = ssub.s32 1, %s7
  %s10 = scalar_select 0, %s9, %s7
  $region1: #{forward.1} parent=0
    #allocation2 [shape = 'u8[65536]{0}', space=vmem, size = 0x10000, scoped, tag = 'input window, operand 1, single buffered']
    #allocation3 [shape = 's32[1]{0}', space=sflag, size = 0x4, scoped, tag = 'scoped memory for forward.1']
    #allocation4 [shape = 'u8[32768]{0}', space=vmem, size = 0x8000, scoped, tag = 'input window, operand 2, single buffered']
    #allocation5 [shape = 's32[1]{0}', space=sflag, size = 0x4, scoped, tag = 'scoped memory for forward.1']
    %11 = vsyncpa [#allocation3], 0
    %12 = vsyncpa [#allocation5], 0
    // Predicated region
    $region2: #{forward.1} parent=1 // pred_check
      _
    $region3: #{forward.1} parent=1 // pred_check_branch
      %14 = sbr.rel (0) target = $region5
    $region4: #{forward.1} parent=1 // pred_region
      _
    $region5: #{forward.1} parent=1 // pred_fallthru
      _
    // Predicated region
    $region6: #{forward.1} parent=1 // pred_check
      _
    $region7: #{forward.1} parent=1 // pred_check_branch
      %16 = sbr.rel (0) target = $region9
    $region8: #{forward.1} parent=1 // pred_region
      %s18 = ssub.s32 2048, 2048
      %19 = vsyncadd [#allocation3], %s18
      %s20 = sshll.u32 [#allocation2], 4
      %s21 = int_to_ptr.vmem [resolvable:$true] %s20
      %26 = dma.hbm_to_vmem [thread:$0]  %s1, 2048, %s21, [#allocation3], 128, 128, 8
    $region9: #{forward.1} parent=1 // pred_fallthru
      _
    // Predicated region
    $region10: #{forward.1} parent=1 // pred_check
      _
    $region11: #{forward.1} parent=1 // pred_check_branch
      %28 = sbr.rel (0) target = $region13
    $region12: #{forward.1} parent=1 // pred_region
      %s30 = ssub.s32 1024, 1024
      %31 = vsyncadd [#allocation5], %s30
      %s32 = sshll.u32 [#allocation4], 4
      %s33 = int_to_ptr.vmem [resolvable:$true] %s32
      %38 = dma.hbm_to_vmem [thread:$0]  %s2, 1024, %s33, [#allocation5], 64, 64, 4
    $region13: #{forward.1} parent=1 // pred_fallthru
      _
    // Predicated region
    $region14: #{forward.1} parent=1 // pred_check
      _
    $region15: #{forward.1} parent=1 // pred_check_branch
      %40 = sbr.rel (0) target = $region17
    $region16: #{forward.1} parent=1 // pred_region
      _
    $region17: #{forward.1} parent=1 // pred_fallthru
      _
    // Predicated region
    $region18: #{forward.1} parent=1 // pred_check
      _
    $region19: #{forward.1} parent=1 // pred_check_branch
      %42 = sbr.rel (0) target = $region21
    $region20: #{forward.1} parent=1 // pred_region
      _
    $region21: #{forward.1} parent=1 // pred_fallthru
      _
    // Predicated region
    $region22: #{forward.1} parent=1 // pred_check
      _
    $region23: #{forward.1} parent=1 // pred_check_branch
      %44 = sbr.rel (0) target = $region25
    $region24: #{forward.1} parent=1 // pred_region
      _
    $region25: #{forward.1} parent=1 // pred_fallthru
      _
    // Predicated region
    $region26: #{forward.1} parent=1 // pred_check
      _
    $region27: #{forward.1} parent=1 // pred_check_branch
      %46 = sbr.rel (0) target = $region29
    $region28: #{forward.1} parent=1 // pred_region
      %47 = dma.done [#allocation3], 2048
    $region29: #{forward.1} parent=1 // pred_fallthru
      _
    // Predicated region
    $region30: #{forward.1} parent=1 // pred_check
      _
    $region31: #{forward.1} parent=1 // pred_check_branch
      %49 = sbr.rel (0) target = $region33
    $region32: #{forward.1} parent=1 // pred_region
      %50 = dma.done [#allocation5], 1024
    $region33: #{forward.1} parent=1 // pred_fallthru
      _
    %v52 = vld [vmem:[%s0] sm:$0xff]
    %v53 = vld [vmem:[%s0 + $0x8] sm:$0xff]
    %v54 = vld [vmem:[%s0 + $0x10] sm:$0xff]
    %v55 = vld [vmem:[%s0 + $0x18] sm:$0xff]
    %v56 = vld [vmem:[%s0 + $0x20] sm:$0xff]
    %v57 = vld [vmem:[%s0 + $0x28] sm:$0xff]
    %v58 = vld [vmem:[%s0 + $0x30] sm:$0xff]
    %v59 = vld [vmem:[%s0 + $0x38] sm:$0xff]
    %v60 = vpack.c.bf16 %v53, %v52
    %v61 = vpack.c.bf16 %v55, %v54
    %v62 = vpack.c.bf16 %v57, %v56
    %v63 = vpack.c.bf16 %v59, %v58
    %v64 = vld [vmem:[#allocation2] sm:$0xff]
    %v65 = vld [vmem:[#allocation2 + $0x8] sm:$0xff]
    %v66 = vld [vmem:[#allocation2 + $0x10] sm:$0xff]
    %v67 = vld [vmem:[#allocation2 + $0x18] sm:$0xff]
    %v68 = vld [vmem:[#allocation2 + $0x20] sm:$0xff]
    %v69 = vld [vmem:[#allocation2 + $0x28] sm:$0xff]
    %v70 = vld [vmem:[#allocation2 + $0x30] sm:$0xff]
    %v71 = vld [vmem:[#allocation2 + $0x38] sm:$0xff]
    %v72 = vld [vmem:[#allocation2 + $0x40] sm:$0xff]
    %v73 = vld [vmem:[#allocation2 + $0x48] sm:$0xff]
    %v74 = vld [vmem:[#allocation2 + $0x50] sm:$0xff]
    %v75 = vld [vmem:[#allocation2 + $0x58] sm:$0xff]
    %v76 = vld [vmem:[#allocation2 + $0x60] sm:$0xff]
    %v77 = vld [vmem:[#allocation2 + $0x68] sm:$0xff]
    %v78 = vld [vmem:[#allocation2 + $0x70] sm:$0xff]
    %v79 = vld [vmem:[#allocation2 + $0x78] sm:$0xff]
    %v96 = vunpack.c.l.b16 %v64
    %v97 = vunpack.c.h.b16 %v64
    %v98 = vunpack.c.l.b16 %v65
    %v99 = vunpack.c.h.b16 %v65
    %v100 = vunpack.c.l.b16 %v66
    %v101 = vunpack.c.h.b16 %v66
    %v102 = vunpack.c.l.b16 %v67
    %v103 = vunpack.c.h.b16 %v67
    %v104 = vunpack.c.l.b16 %v68
    %v105 = vunpack.c.h.b16 %v68
    %v106 = vunpack.c.l.b16 %v69
    %v107 = vunpack.c.h.b16 %v69
    %v108 = vunpack.c.l.b16 %v70
    %v109 = vunpack.c.h.b16 %v70
    %v110 = vunpack.c.l.b16 %v71
    %v111 = vunpack.c.h.b16 %v71
    %v112 = vunpack.c.l.b16 %v72
    %v113 = vunpack.c.h.b16 %v72
    %v114 = vunpack.c.l.b16 %v73
    %v115 = vunpack.c.h.b16 %v73
    %v116 = vunpack.c.l.b16 %v74
    %v117 = vunpack.c.h.b16 %v74
    %v118 = vunpack.c.l.b16 %v75
    %v119 = vunpack.c.h.b16 %v75
    %v120 = vunpack.c.l.b16 %v76
    %v121 = vunpack.c.h.b16 %v76
    %v122 = vunpack.c.l.b16 %v77
    %v123 = vunpack.c.h.b16 %v77
    %v124 = vunpack.c.l.b16 %v78
    %v125 = vunpack.c.h.b16 %v78
    %v126 = vunpack.c.l.b16 %v79
    %v127 = vunpack.c.h.b16 %v79
    %v128 = vpack.c.b16 %v98, %v96
    %v129 = vpack.c.b16 %v99, %v97
    %v130 = vpack.c.b16 %v102, %v100
    %v131 = vpack.c.b16 %v103, %v101
    %v132 = vpack.c.b16 %v106, %v104
    %v133 = vpack.c.b16 %v107, %v105
    %v134 = vpack.c.b16 %v110, %v108
    %v135 = vpack.c.b16 %v111, %v109
    %v136 = vpack.c.b16 %v114, %v112
    %v137 = vpack.c.b16 %v115, %v113
    %v138 = vpack.c.b16 %v118, %v116
    %v139 = vpack.c.b16 %v119, %v117
    %v140 = vpack.c.b16 %v122, %v120
    %v141 = vpack.c.b16 %v123, %v121
    %v142 = vpack.c.b16 %v126, %v124
    %v143 = vpack.c.b16 %v127, %v125
    %160 = vmatprep.subr.bf16.mxu0 %v129
    %161 = vmatpush1.bf16.msra.mxu0 %v128
    %162 = vmatprep.subr.bf16.mxu0 %v131
    %163 = vmatpush1.bf16.msra.mxu0 %v130
    %164 = vmatprep.subr.bf16.mxu0 %v133
    %165 = vmatpush1.bf16.msra.mxu0 %v132
    %166 = vmatprep.subr.bf16.mxu0 %v135
    %167 = vmatpush1.bf16.msra.mxu0 %v134
    %168 = vmatprep.subr.bf16.mxu0 %v137
    %169 = vmatpush1.bf16.msra.mxu0 %v136
    %170 = vmatprep.subr.bf16.mxu0 %v139
    %171 = vmatpush1.bf16.msra.mxu0 %v138
    %172 = vmatprep.subr.bf16.mxu0 %v141
    %173 = vmatpush1.bf16.msra.mxu0 %v140
    %174 = vmatprep.subr.bf16.mxu0 %v143
    %175 = vmatpush1.bf16.msra.mxu0 %v142
    %176 = vmatprep.subr.bf16.mxu0 0
    %177 = vmatpush1.bf16.msra.mxu0 0
    %178 = vmatprep.subr.bf16.mxu0 0
    %179 = vmatpush1.bf16.msra.mxu0 0
    %180 = vmatprep.subr.bf16.mxu0 0
    %181 = vmatpush1.bf16.msra.mxu0 0
    %182 = vmatprep.subr.bf16.mxu0 0
    %183 = vmatpush1.bf16.msra.mxu0 0
    %184 = vmatprep.subr.bf16.mxu0 0
    %185 = vmatpush1.bf16.msra.mxu0 0
    %186 = vmatprep.subr.bf16.mxu0 0
    %187 = vmatpush1.bf16.msra.mxu0 0
    %188 = vmatprep.subr.bf16.mxu0 0
    %189 = vmatpush1.bf16.msra.mxu0 0
    %190 = vmatprep.subr.bf16.mxu0 0
    %191 = vmatpush1.bf16.msra.mxu0 0
    %192 = vmatprep.mubr.bf16.mxu0 0
    %193 = vmatmul.mubr.bf16.gmra.mrb[0].mxu0 %v60
    %v194 = vpop.f32.mrb[0].mxu0
    %v195 = vadd.f32 0.0, %v194
    %v196 = vpop.f32.mrb[0].mxu0
    %v197 = vadd.f32 0.0, %v196
    %v198 = vpop.f32.mrb[0].mxu0
    %v199 = vadd.f32 0.0, %v198
    %v200 = vpop.f32.mrb[0].mxu0
    %v201 = vadd.f32 0.0, %v200
    %202 = vmatprep.mubr.bf16.mxu0 0
    %203 = vmatmul.mubr.bf16.gmra.mrb[0].mxu0 %v61
    %v204 = vpop.f32.mrb[0].mxu0
    %v205 = vadd.f32 0.0, %v204
    %v206 = vpop.f32.mrb[0].mxu0
    %v207 = vadd.f32 0.0, %v206
    %v208 = vpop.f32.mrb[0].mxu0
    %v209 = vadd.f32 0.0, %v208
    %v210 = vpop.f32.mrb[0].mxu0
    %v211 = vadd.f32 0.0, %v210
    %212 = vmatprep.mubr.bf16.mxu0 0
    %213 = vmatmul.mubr.bf16.gmra.mrb[0].mxu0 %v62
    %v214 = vpop.f32.mrb[0].mxu0
    %v215 = vadd.f32 0.0, %v214
    %v216 = vpop.f32.mrb[0].mxu0
    %v217 = vadd.f32 0.0, %v216
    %v218 = vpop.f32.mrb[0].mxu0
    %v219 = vadd.f32 0.0, %v218
    %v220 = vpop.f32.mrb[0].mxu0
    %v221 = vadd.f32 0.0, %v220
    %222 = vmatprep.mubr.bf16.mxu0 0
    %223 = vmatmul.mubr.bf16.gmra.mrb[0].mxu0 %v63
    %v224 = vpop.f32.mrb[0].mxu0
    %v225 = vadd.f32 0.0, %v224
    %v226 = vpop.f32.mrb[0].mxu0
    %v227 = vadd.f32 0.0, %v226
    %v228 = vpop.f32.mrb[0].mxu0
    %v229 = vadd.f32 0.0, %v228
    %v230 = vpop.f32.mrb[0].mxu0
    %v231 = vadd.f32 0.0, %v230
    %232 = vdwg.mxu0
    %v233 = vxor.u32 %v197, 2147483648
    %v234 = vxor.u32 %v201, 2147483648
    %v235 = vxor.u32 %v207, 2147483648
    %v236 = vxor.u32 %v211, 2147483648
    %v237 = vxor.u32 %v217, 2147483648
    %v238 = vxor.u32 %v221, 2147483648
    %v239 = vxor.u32 %v227, 2147483648
    %v240 = vxor.u32 %v231, 2147483648
    %v241 = vmul.f32 %v233, 1.442695
    %v242 = vpow.pop %v241
    %v243 = vmul.f32 %v234, 1.442695
    %v244 = vpow.pop %v243
    %v245 = vmul.f32 %v235, 1.442695
    %v246 = vpow.pop %v245
    %v247 = vmul.f32 %v236, 1.442695
    %v248 = vpow.pop %v247
    %v249 = vmul.f32 %v237, 1.442695
    %v250 = vpow.pop %v249
    %v251 = vmul.f32 %v238, 1.442695
    %v252 = vpow.pop %v251
    %v253 = vmul.f32 %v239, 1.442695
    %v254 = vpow.pop %v253
    %v255 = vmul.f32 %v240, 1.442695
    %v256 = vpow.pop %v255
    %v257 = vadd.f32 %v242, 1.0
    %v258 = vadd.f32 %v244, 1.0
    %v259 = vadd.f32 %v246, 1.0
    %v260 = vadd.f32 %v248, 1.0
    %v261 = vadd.f32 %v250, 1.0
    %v262 = vadd.f32 %v252, 1.0
    %v263 = vadd.f32 %v254, 1.0
    %v264 = vadd.f32 %v256, 1.0
    %v265 = vrcp.pop %v257
    %v266 = vmul.f32 1.0, %v265
    %v267 = vrcp.pop %v258
    %v268 = vmul.f32 1.0, %v267
    %v269 = vrcp.pop %v259
    %v270 = vmul.f32 1.0, %v269
    %v271 = vrcp.pop %v260
    %v272 = vmul.f32 1.0, %v271
    %v273 = vrcp.pop %v261
    %v274 = vmul.f32 1.0, %v273
    %v275 = vrcp.pop %v262
    %v276 = vmul.f32 1.0, %v275
    %v277 = vrcp.pop %v263
    %v278 = vmul.f32 1.0, %v277
    %v279 = vrcp.pop %v264
    %v280 = vmul.f32 1.0, %v279
    %v281 = vmul.f32 %v195, %v266
    %v282 = vmul.f32 %v199, %v268
    %v283 = vmul.f32 %v205, %v270
    %v284 = vmul.f32 %v209, %v272
    %v285 = vmul.f32 %v215, %v274
    %v286 = vmul.f32 %v219, %v276
    %v287 = vmul.f32 %v225, %v278
    %v288 = vmul.f32 %v229, %v280
    %v289 = vld [vmem:[%s3 + $0x7] ss:$0 sm:$0xff]
    %v290 = vmul.f32 %v281, %v289
    %v291 = vmul.f32 %v282, %v289
    %v292 = vmul.f32 %v283, %v289
    %v293 = vmul.f32 %v284, %v289
    %v294 = vmul.f32 %v285, %v289
    %v295 = vmul.f32 %v286, %v289
    %v296 = vmul.f32 %v287, %v289
    %v297 = vmul.f32 %v288, %v289
    %v298 = vrot.slane %v281, 1
    %v299 = vrot.slane %v282, 1
    %v300 = vrot.slane %v283, 1
    %v301 = vrot.slane %v284, 1
    %v302 = vrot.slane %v285, 1
    %v303 = vrot.slane %v286, 1
    %v304 = vrot.slane %v287, 1
    %v305 = vrot.slane %v288, 1
    %v306 = vlaneseq
    %v307 = vshrl.u32 %v306, 7
    %vm308 = vcmp.lt.s32.totalorder %v307, 7
    %v309 = vsel %vm308, %v304, %v305
    %v310 = vsel %vm308, %v303, %v304
    %v311 = vsel %vm308, %v302, %v303
    %v312 = vsel %vm308, %v301, %v302
    %v313 = vsel %vm308, %v300, %v301
    %v314 = vsel %vm308, %v299, %v300
    %v315 = vsel %vm308, %v298, %v299
    %v316 = vsel %vm308, %v305, %v298
    %v317 = vld [vmem:[%s3] ss:$0 sm:$0xff]
    %v318 = vmul.f32 %v316, %v317
    %v319 = vmul.f32 %v315, %v317
    %v320 = vmul.f32 %v314, %v317
    %v321 = vmul.f32 %v313, %v317
    %v322 = vmul.f32 %v312, %v317
    %v323 = vmul.f32 %v311, %v317
    %v324 = vmul.f32 %v310, %v317
    %v325 = vmul.f32 %v309, %v317
    %v326 = vadd.f32 %v290, %v318
    %v327 = vadd.f32 %v291, %v319
    %v328 = vadd.f32 %v292, %v320
    %v329 = vadd.f32 %v293, %v321
    %v330 = vadd.f32 %v294, %v322
    %v331 = vadd.f32 %v295, %v323
    %v332 = vadd.f32 %v296, %v324
    %v333 = vadd.f32 %v297, %v325
    %v334 = vrot.slane %v281, 2
    %v335 = vrot.slane %v282, 2
    %v336 = vrot.slane %v283, 2
    %v337 = vrot.slane %v284, 2
    %v338 = vrot.slane %v285, 2
    %v339 = vrot.slane %v286, 2
    %v340 = vrot.slane %v287, 2
    %v341 = vrot.slane %v288, 2
    %vm342 = vcmp.lt.s32.totalorder %v307, 6
    %v343 = vsel %vm342, %v340, %v341
    %v344 = vsel %vm342, %v339, %v340
    %v345 = vsel %vm342, %v338, %v339
    %v346 = vsel %vm342, %v337, %v338
    %v347 = vsel %vm342, %v336, %v337
    %v348 = vsel %vm342, %v335, %v336
    %v349 = vsel %vm342, %v334, %v335
    %v350 = vsel %vm342, %v341, %v334
    %v351 = vld [vmem:[%s3 + $0x1] ss:$0 sm:$0xff]
    %v352 = vmul.f32 %v350, %v351
    %v353 = vmul.f32 %v349, %v351
    %v354 = vmul.f32 %v348, %v351
    %v355 = vmul.f32 %v347, %v351
    %v356 = vmul.f32 %v346, %v351
    %v357 = vmul.f32 %v345, %v351
    %v358 = vmul.f32 %v344, %v351
    %v359 = vmul.f32 %v343, %v351
    %v360 = vadd.f32 %v326, %v352
    %v361 = vadd.f32 %v327, %v353
    %v362 = vadd.f32 %v328, %v354
    %v363 = vadd.f32 %v329, %v355
    %v364 = vadd.f32 %v330, %v356
    %v365 = vadd.f32 %v331, %v357
    %v366 = vadd.f32 %v332, %v358
    %v367 = vadd.f32 %v333, %v359
    %v368 = vrot.slane %v281, 3
    %v369 = vrot.slane %v282, 3
    %v370 = vrot.slane %v283, 3
    %v371 = vrot.slane %v284, 3
    %v372 = vrot.slane %v285, 3
    %v373 = vrot.slane %v286, 3
    %v374 = vrot.slane %v287, 3
    %v375 = vrot.slane %v288, 3
    %vm376 = vcmp.lt.s32.totalorder %v307, 5
    %v377 = vsel %vm376, %v374, %v375
    %v378 = vsel %vm376, %v373, %v374
    %v379 = vsel %vm376, %v372, %v373
    %v380 = vsel %vm376, %v371, %v372
    %v381 = vsel %vm376, %v370, %v371
    %v382 = vsel %vm376, %v369, %v370
    %v383 = vsel %vm376, %v368, %v369
    %v384 = vsel %vm376, %v375, %v368
    %v385 = vld [vmem:[%s3 + $0x2] ss:$0 sm:$0xff]
    %v386 = vmul.f32 %v384, %v385
    %v387 = vmul.f32 %v383, %v385
    %v388 = vmul.f32 %v382, %v385
    %v389 = vmul.f32 %v381, %v385
    %v390 = vmul.f32 %v380, %v385
    %v391 = vmul.f32 %v379, %v385
    %v392 = vmul.f32 %v378, %v385
    %v393 = vmul.f32 %v377, %v385
    %v394 = vadd.f32 %v360, %v386
    %v395 = vadd.f32 %v361, %v387
    %v396 = vadd.f32 %v362, %v388
    %v397 = vadd.f32 %v363, %v389
    %v398 = vadd.f32 %v364, %v390
    %v399 = vadd.f32 %v365, %v391
    %v400 = vadd.f32 %v366, %v392
    %v401 = vadd.f32 %v367, %v393
    %v402 = vrot.slane %v281, 4
    %v403 = vrot.slane %v282, 4
    %v404 = vrot.slane %v283, 4
    %v405 = vrot.slane %v284, 4
    %v406 = vrot.slane %v285, 4
    %v407 = vrot.slane %v286, 4
    %v408 = vrot.slane %v287, 4
    %v409 = vrot.slane %v288, 4
    %vm410 = vcmp.lt.s32.totalorder %v307, 4
    %v411 = vsel %vm410, %v408, %v409
    %v412 = vsel %vm410, %v407, %v408
    %v413 = vsel %vm410, %v406, %v407
    %v414 = vsel %vm410, %v405, %v406
    %v415 = vsel %vm410, %v404, %v405
    %v416 = vsel %vm410, %v403, %v404
    %v417 = vsel %vm410, %v402, %v403
    %v418 = vsel %vm410, %v409, %v402
    %v419 = vld [vmem:[%s3 + $0x3] ss:$0 sm:$0xff]
    %v420 = vmul.f32 %v418, %v419
    %v421 = vmul.f32 %v417, %v419
    %v422 = vmul.f32 %v416, %v419
    %v423 = vmul.f32 %v415, %v419
    %v424 = vmul.f32 %v414, %v419
    %v425 = vmul.f32 %v413, %v419
    %v426 = vmul.f32 %v412, %v419
    %v427 = vmul.f32 %v411, %v419
    %v428 = vadd.f32 %v394, %v420
    %v429 = vadd.f32 %v395, %v421
    %v430 = vadd.f32 %v396, %v422
    %v431 = vadd.f32 %v397, %v423
    %v432 = vadd.f32 %v398, %v424
    %v433 = vadd.f32 %v399, %v425
    %v434 = vadd.f32 %v400, %v426
    %v435 = vadd.f32 %v401, %v427
    %v436 = vrot.slane %v281, 5
    %v437 = vrot.slane %v282, 5
    %v438 = vrot.slane %v283, 5
    %v439 = vrot.slane %v284, 5
    %v440 = vrot.slane %v285, 5
    %v441 = vrot.slane %v286, 5
    %v442 = vrot.slane %v287, 5
    %v443 = vrot.slane %v288, 5
    %vm444 = vcmp.lt.s32.totalorder %v307, 3
    %v445 = vsel %vm444, %v442, %v443
    %v446 = vsel %vm444, %v441, %v442
    %v447 = vsel %vm444, %v440, %v441
    %v448 = vsel %vm444, %v439, %v440
    %v449 = vsel %vm444, %v438, %v439
    %v450 = vsel %vm444, %v437, %v438
    %v451 = vsel %vm444, %v436, %v437
    %v452 = vsel %vm444, %v443, %v436
    %v453 = vld [vmem:[%s3 + $0x4] ss:$0 sm:$0xff]
    %v454 = vmul.f32 %v452, %v453
    %v455 = vmul.f32 %v451, %v453
    %v456 = vmul.f32 %v450, %v453
    %v457 = vmul.f32 %v449, %v453
    %v458 = vmul.f32 %v448, %v453
    %v459 = vmul.f32 %v447, %v453
    %v460 = vmul.f32 %v446, %v453
    %v461 = vmul.f32 %v445, %v453
    %v462 = vadd.f32 %v428, %v454
    %v463 = vadd.f32 %v429, %v455
    %v464 = vadd.f32 %v430, %v456
    %v465 = vadd.f32 %v431, %v457
    %v466 = vadd.f32 %v432, %v458
    %v467 = vadd.f32 %v433, %v459
    %v468 = vadd.f32 %v434, %v460
    %v469 = vadd.f32 %v435, %v461
    %v470 = vrot.slane %v281, 6
    %v471 = vrot.slane %v282, 6
    %v472 = vrot.slane %v283, 6
    %v473 = vrot.slane %v284, 6
    %v474 = vrot.slane %v285, 6
    %v475 = vrot.slane %v286, 6
    %v476 = vrot.slane %v287, 6
    %v477 = vrot.slane %v288, 6
    %vm478 = vcmp.lt.s32.totalorder %v307, 2
    %v479 = vsel %vm478, %v476, %v477
    %v480 = vsel %vm478, %v475, %v476
    %v481 = vsel %vm478, %v474, %v475
    %v482 = vsel %vm478, %v473, %v474
    %v483 = vsel %vm478, %v472, %v473
    %v484 = vsel %vm478, %v471, %v472
    %v485 = vsel %vm478, %v470, %v471
    %v486 = vsel %vm478, %v477, %v470
    %v487 = vld [vmem:[%s3 + $0x5] ss:$0 sm:$0xff]
    %v488 = vmul.f32 %v486, %v487
    %v489 = vmul.f32 %v485, %v487
    %v490 = vmul.f32 %v484, %v487
    %v491 = vmul.f32 %v483, %v487
    %v492 = vmul.f32 %v482, %v487
    %v493 = vmul.f32 %v481, %v487
    %v494 = vmul.f32 %v480, %v487
    %v495 = vmul.f32 %v479, %v487
    %v496 = vadd.f32 %v462, %v488
    %v497 = vadd.f32 %v463, %v489
    %v498 = vadd.f32 %v464, %v490
    %v499 = vadd.f32 %v465, %v491
    %v500 = vadd.f32 %v466, %v492
    %v501 = vadd.f32 %v467, %v493
    %v502 = vadd.f32 %v468, %v494
    %v503 = vadd.f32 %v469, %v495
    %v504 = vrot.slane %v281, 7
    %v505 = vrot.slane %v282, 7
    %v506 = vrot.slane %v283, 7
    %v507 = vrot.slane %v284, 7
    %v508 = vrot.slane %v285, 7
    %v509 = vrot.slane %v286, 7
    %v510 = vrot.slane %v287, 7
    %v511 = vrot.slane %v288, 7
    %vm512 = vcmp.lt.s32.totalorder %v307, 1
    %v513 = vsel %vm512, %v510, %v511
    %v514 = vsel %vm512, %v509, %v510
    %v515 = vsel %vm512, %v508, %v509
    %v516 = vsel %vm512, %v507, %v508
    %v517 = vsel %vm512, %v506, %v507
    %v518 = vsel %vm512, %v505, %v506
    %v519 = vsel %vm512, %v504, %v505
    %v520 = vsel %vm512, %v511, %v504
    %v521 = vld [vmem:[%s3 + $0x6] ss:$0 sm:$0xff]
    %v522 = vmul.f32 %v520, %v521
    %v523 = vmul.f32 %v519, %v521
    %v524 = vmul.f32 %v518, %v521
    %v525 = vmul.f32 %v517, %v521
    %v526 = vmul.f32 %v516, %v521
    %v527 = vmul.f32 %v515, %v521
    %v528 = vmul.f32 %v514, %v521
    %v529 = vmul.f32 %v513, %v521
    %v530 = vadd.f32 %v496, %v522
    %v531 = vadd.f32 %v497, %v523
    %v532 = vadd.f32 %v498, %v524
    %v533 = vadd.f32 %v499, %v525
    %v534 = vadd.f32 %v500, %v526
    %v535 = vadd.f32 %v501, %v527
    %v536 = vadd.f32 %v502, %v528
    %v537 = vadd.f32 %v503, %v529
    %v538 = vld [vmem:[%s3 + $0x8] ss:$0 sm:$0xff]
    %v539 = vmul.f32 %v315, %v538
    %v540 = vmul.f32 %v314, %v538
    %v541 = vmul.f32 %v313, %v538
    %v542 = vmul.f32 %v312, %v538
    %v543 = vmul.f32 %v311, %v538
    %v544 = vmul.f32 %v310, %v538
    %v545 = vmul.f32 %v309, %v538
    %v546 = vmul.f32 %v316, %v538
    %v547 = vadd.f32 %v530, %v539
    %v548 = vadd.f32 %v531, %v540
    %v549 = vadd.f32 %v532, %v541
    %v550 = vadd.f32 %v533, %v542
    %v551 = vadd.f32 %v534, %v543
    %v552 = vadd.f32 %v535, %v544
    %v553 = vadd.f32 %v536, %v545
    %v554 = vadd.f32 %v537, %v546
    %v555 = vld [vmem:[%s3 + $0x9] ss:$0 sm:$0xff]
    %v556 = vmul.f32 %v349, %v555
    %v557 = vmul.f32 %v348, %v555
    %v558 = vmul.f32 %v347, %v555
    %v559 = vmul.f32 %v346, %v555
    %v560 = vmul.f32 %v345, %v555
    %v561 = vmul.f32 %v344, %v555
    %v562 = vmul.f32 %v343, %v555
    %v563 = vmul.f32 %v350, %v555
    %v564 = vadd.f32 %v547, %v556
    %v565 = vadd.f32 %v548, %v557
    %v566 = vadd.f32 %v549, %v558
    %v567 = vadd.f32 %v550, %v559
    %v568 = vadd.f32 %v551, %v560
    %v569 = vadd.f32 %v552, %v561
    %v570 = vadd.f32 %v553, %v562
    %v571 = vadd.f32 %v554, %v563
    %v572 = vld [vmem:[%s3 + $0xa] ss:$0 sm:$0xff]
    %v573 = vmul.f32 %v383, %v572
    %v574 = vmul.f32 %v382, %v572
    %v575 = vmul.f32 %v381, %v572
    %v576 = vmul.f32 %v380, %v572
    %v577 = vmul.f32 %v379, %v572
    %v578 = vmul.f32 %v378, %v572
    %v579 = vmul.f32 %v377, %v572
    %v580 = vmul.f32 %v384, %v572
    %v581 = vadd.f32 %v564, %v573
    %v582 = vadd.f32 %v565, %v574
    %v583 = vadd.f32 %v566, %v575
    %v584 = vadd.f32 %v567, %v576
    %v585 = vadd.f32 %v568, %v577
    %v586 = vadd.f32 %v569, %v578
    %v587 = vadd.f32 %v570, %v579
    %v588 = vadd.f32 %v571, %v580
    %v589 = vld [vmem:[%s3 + $0xb] ss:$0 sm:$0xff]
    %v590 = vmul.f32 %v417, %v589
    %v591 = vmul.f32 %v416, %v589
    %v592 = vmul.f32 %v415, %v589
    %v593 = vmul.f32 %v414, %v589
    %v594 = vmul.f32 %v413, %v589
    %v595 = vmul.f32 %v412, %v589
    %v596 = vmul.f32 %v411, %v589
    %v597 = vmul.f32 %v418, %v589
    %v598 = vadd.f32 %v581, %v590
    %v599 = vadd.f32 %v582, %v591
    %v600 = vadd.f32 %v583, %v592
    %v601 = vadd.f32 %v584, %v593
    %v602 = vadd.f32 %v585, %v594
    %v603 = vadd.f32 %v586, %v595
    %v604 = vadd.f32 %v587, %v596
    %v605 = vadd.f32 %v588, %v597
    %v606 = vld [vmem:[%s3 + $0xc] ss:$0 sm:$0xff]
    %v607 = vmul.f32 %v451, %v606
    %v608 = vmul.f32 %v450, %v606
    %v609 = vmul.f32 %v449, %v606
    %v610 = vmul.f32 %v448, %v606
    %v611 = vmul.f32 %v447, %v606
    %v612 = vmul.f32 %v446, %v606
    %v613 = vmul.f32 %v445, %v606
    %v614 = vmul.f32 %v452, %v606
    %v615 = vadd.f32 %v598, %v607
    %v616 = vadd.f32 %v599, %v608
    %v617 = vadd.f32 %v600, %v609
    %v618 = vadd.f32 %v601, %v610
    %v619 = vadd.f32 %v602, %v611
    %v620 = vadd.f32 %v603, %v612
    %v621 = vadd.f32 %v604, %v613
    %v622 = vadd.f32 %v605, %v614
    %v623 = vld [vmem:[%s3 + $0xd] ss:$0 sm:$0xff]
    %v624 = vmul.f32 %v485, %v623
    %v625 = vmul.f32 %v484, %v623
    %v626 = vmul.f32 %v483, %v623
    %v627 = vmul.f32 %v482, %v623
    %v628 = vmul.f32 %v481, %v623
    %v629 = vmul.f32 %v480, %v623
    %v630 = vmul.f32 %v479, %v623
    %v631 = vmul.f32 %v486, %v623
    %v632 = vadd.f32 %v615, %v624
    %v633 = vadd.f32 %v616, %v625
    %v634 = vadd.f32 %v617, %v626
    %v635 = vadd.f32 %v618, %v627
    %v636 = vadd.f32 %v619, %v628
    %v637 = vadd.f32 %v620, %v629
    %v638 = vadd.f32 %v621, %v630
    %v639 = vadd.f32 %v622, %v631
    %v640 = vld [vmem:[%s3 + $0xe] ss:$0 sm:$0xff]
    %v641 = vmul.f32 %v519, %v640
    %v642 = vmul.f32 %v518, %v640
    %v643 = vmul.f32 %v517, %v640
    %v644 = vmul.f32 %v516, %v640
    %v645 = vmul.f32 %v515, %v640
    %v646 = vmul.f32 %v514, %v640
    %v647 = vmul.f32 %v513, %v640
    %v648 = vmul.f32 %v520, %v640
    %v649 = vadd.f32 %v632, %v641
    %v650 = vadd.f32 %v633, %v642
    %v651 = vadd.f32 %v634, %v643
    %v652 = vadd.f32 %v635, %v644
    %v653 = vadd.f32 %v636, %v645
    %v654 = vadd.f32 %v637, %v646
    %v655 = vadd.f32 %v638, %v647
    %v656 = vadd.f32 %v639, %v648
    %v657 = vadd.s32 %v307, 8
    %v658 = vadd.s32 %v307, 16
    %v659 = vadd.s32 %v307, 24
    %v660 = vadd.s32 %v307, 32
    %v661 = vadd.s32 %v307, 40
    %v662 = vadd.s32 %v307, 48
    %v663 = vadd.s32 %v307, 56
    %v664 = vand.u32 %v307, 31
    %v665 = vand.u32 %v657, 31
    %v666 = vand.u32 %v658, 31
    %v667 = vand.u32 %v659, 31
    %v668 = vand.u32 %v660, 31
    %v669 = vand.u32 %v661, 31
    %v670 = vand.u32 %v662, 31
    %v671 = vand.u32 %v663, 31
    %vm672 = vcmp.lt.s32.totalorder %v664, 24
    %vm673 = vcmp.lt.s32.totalorder %v665, 24
    %vm674 = vcmp.lt.s32.totalorder %v666, 24
    %vm675 = vcmp.lt.s32.totalorder %v667, 24
    %vm676 = vcmp.lt.s32.totalorder %v668, 24
    %vm677 = vcmp.lt.s32.totalorder %v669, 24
    %vm678 = vcmp.lt.s32.totalorder %v670, 24
    %vm679 = vcmp.lt.s32.totalorder %v671, 24
    %v680 = vsel %vm672, 1, 0
    %v681 = vsel %vm673, 1, 0
    %v682 = vsel %vm674, 1, 0
    %v683 = vsel %vm675, 1, 0
    %v684 = vsel %vm676, 1, 0
    %v685 = vsel %vm677, 1, 0
    %v686 = vsel %vm678, 1, 0
    %v687 = vsel %vm679, 1, 0
    %v688 = vcvt.s32.f32 %v680
    %v689 = vcvt.s32.f32 %v681
    %v690 = vcvt.s32.f32 %v682
    %v691 = vcvt.s32.f32 %v683
    %v692 = vcvt.s32.f32 %v684
    %v693 = vcvt.s32.f32 %v685
    %v694 = vcvt.s32.f32 %v686
    %v695 = vcvt.s32.f32 %v687
    %v696 = vmul.f32 %v649, %v688
    %v697 = vmul.f32 %v650, %v689
    %v698 = vmul.f32 %v651, %v690
    %v699 = vmul.f32 %v652, %v691
    %v700 = vmul.f32 %v653, %v692
    %v701 = vmul.f32 %v654, %v693
    %v702 = vmul.f32 %v655, %v694
    %v703 = vmul.f32 %v656, %v695
    %v704 = vadd.f32 %v696, %v697
    %v705 = vadd.f32 %v704, %v698
    %v706 = vadd.f32 %v705, %v699
    %v707 = vadd.f32 %v706, %v700
    %v708 = vadd.f32 %v707, %v701
    %v709 = vadd.f32 %v708, %v702
    %v710 = vadd.f32 %v709, %v703
    %v711 = vrot.slane %v710, 4
    %v712 = vadd.f32 %v710, %v711
    %v713 = vrot.slane %v712, 2
    %v714 = vadd.f32 %v712, %v713
    %v715 = vrot.slane %v714, 1
    %v716 = vadd.f32 %v714, %v715
    %v717 = vmul.f32 %v716, 0.020833334
    %v718 = vsub.f32 %v649, %v717
    %v719 = vsub.f32 %v650, %v717
    %v720 = vsub.f32 %v651, %v717
    %v721 = vsub.f32 %v652, %v717
    %v722 = vsub.f32 %v653, %v717
    %v723 = vsub.f32 %v654, %v717
    %v724 = vsub.f32 %v655, %v717
    %v725 = vsub.f32 %v656, %v717
    %v726 = vmul.f32 %v718, %v688
    %v727 = vmul.f32 %v719, %v689
    %v728 = vmul.f32 %v720, %v690
    %v729 = vmul.f32 %v721, %v691
    %v730 = vmul.f32 %v722, %v692
    %v731 = vmul.f32 %v723, %v693
    %v732 = vmul.f32 %v724, %v694
    %v733 = vmul.f32 %v725, %v695
    %v734 = vmul.f32 %v726, %v726
    %v735 = vmul.f32 %v727, %v727
    %v736 = vmul.f32 %v728, %v728
    %v737 = vmul.f32 %v729, %v729
    %v738 = vmul.f32 %v730, %v730
    %v739 = vmul.f32 %v731, %v731
    %v740 = vmul.f32 %v732, %v732
    %v741 = vmul.f32 %v733, %v733
    %v742 = vadd.f32 %v734, %v735
    %v743 = vadd.f32 %v742, %v736
    %v744 = vadd.f32 %v743, %v737
    %v745 = vadd.f32 %v744, %v738
    %v746 = vadd.f32 %v745, %v739
    %v747 = vadd.f32 %v746, %v740
    %v748 = vadd.f32 %v747, %v741
    %v749 = vrot.slane %v748, 4
    %v750 = vadd.f32 %v748, %v749
    %v751 = vrot.slane %v750, 2
    %v752 = vadd.f32 %v750, %v751
    %v753 = vrot.slane %v752, 1
    %v754 = vadd.f32 %v752, %v753
    %v755 = vmul.f32 %v754, 0.020833334
    %v756 = vld [vmem:[%s4] sm:$0x1]
    %v757 = vadd.f32 %v755, 1e-05
    %v758 = vrsqrt.pop %v757
    %v759 = vmul.f32 %v756, %v758
    %v760 = vld [vmem:[%s5] sm:$0x1]
    %v761 = vmul.f32 %v717, %v759
    %v762 = vsub.f32 %v760, %v761
    %v764 = vlaneseq
    %v765 = vshrl.u32 %v764, 7
    %v766 = vsub.s32 0, %v765
    %v767 = vrot.slane %v759, %v766
    %v769 = vmul.f32 %v649, %v767
    %v770 = vmul.f32 %v650, %v767
    %v771 = vmul.f32 %v651, %v767
    %v772 = vmul.f32 %v652, %v767
    %v773 = vmul.f32 %v653, %v767
    %v774 = vmul.f32 %v654, %v767
    %v775 = vmul.f32 %v655, %v767
    %v776 = vmul.f32 %v656, %v767
    %v778 = vlaneseq
    %v779 = vshrl.u32 %v778, 7
    %v780 = vsub.s32 0, %v779
    %v781 = vrot.slane %v762, %v780
    %v783 = vadd.f32 %v769, %v781
    %v784 = vadd.f32 %v770, %v781
    %v785 = vadd.f32 %v771, %v781
    %v786 = vadd.f32 %v772, %v781
    %v787 = vadd.f32 %v773, %v781
    %v788 = vadd.f32 %v774, %v781
    %v789 = vadd.f32 %v775, %v781
    %v790 = vadd.f32 %v776, %v781
    %v791 = vxor.u32 %v783, 2147483648
    %v792 = vxor.u32 %v784, 2147483648
    %v793 = vxor.u32 %v785, 2147483648
    %v794 = vxor.u32 %v786, 2147483648
    %v795 = vxor.u32 %v787, 2147483648
    %v796 = vxor.u32 %v788, 2147483648
    %v797 = vxor.u32 %v789, 2147483648
    %v798 = vxor.u32 %v790, 2147483648
    %v799 = vmul.f32 %v791, 1.442695
    %v800 = vpow.pop %v799
    %v801 = vmul.f32 %v792, 1.442695
    %v802 = vpow.pop %v801
    %v803 = vmul.f32 %v793, 1.442695
    %v804 = vpow.pop %v803
    %v805 = vmul.f32 %v794, 1.442695
    %v806 = vpow.pop %v805
    %v807 = vmul.f32 %v795, 1.442695
    %v808 = vpow.pop %v807
    %v809 = vmul.f32 %v796, 1.442695
    %v810 = vpow.pop %v809
    %v811 = vmul.f32 %v797, 1.442695
    %v812 = vpow.pop %v811
    %v813 = vmul.f32 %v798, 1.442695
    %v814 = vpow.pop %v813
    %v815 = vadd.f32 %v800, 1.0
    %v816 = vadd.f32 %v802, 1.0
    %v817 = vadd.f32 %v804, 1.0
    %v818 = vadd.f32 %v806, 1.0
    %v819 = vadd.f32 %v808, 1.0
    %v820 = vadd.f32 %v810, 1.0
    %v821 = vadd.f32 %v812, 1.0
    %v822 = vadd.f32 %v814, 1.0
    %v823 = vrcp.pop %v815
    %v824 = vmul.f32 1.0, %v823
    %v825 = vrcp.pop %v816
    %v826 = vmul.f32 1.0, %v825
    %v827 = vrcp.pop %v817
    %v828 = vmul.f32 1.0, %v827
    %v829 = vrcp.pop %v818
    %v830 = vmul.f32 1.0, %v829
    %v831 = vrcp.pop %v819
    %v832 = vmul.f32 1.0, %v831
    %v833 = vrcp.pop %v820
    %v834 = vmul.f32 1.0, %v833
    %v835 = vrcp.pop %v821
    %v836 = vmul.f32 1.0, %v835
    %v837 = vrcp.pop %v822
    %v838 = vmul.f32 1.0, %v837
    %v839 = vmul.f32 %v783, %v824
    %v840 = vmul.f32 %v784, %v826
    %v841 = vmul.f32 %v785, %v828
    %v842 = vmul.f32 %v786, %v830
    %v843 = vmul.f32 %v787, %v832
    %v844 = vmul.f32 %v788, %v834
    %v845 = vmul.f32 %v789, %v836
    %v846 = vmul.f32 %v790, %v838
    %v847 = vpack.c.bf16 %v840, %v839
    %v848 = vpack.c.bf16 %v842, %v841
    %v849 = vpack.c.bf16 %v844, %v843
    %v850 = vpack.c.bf16 %v846, %v845
    %v851 = vld [vmem:[#allocation4] sm:$0xf]
    %v852 = vld [vmem:[#allocation4 + $0x4] sm:$0xf]
    %v853 = vld [vmem:[#allocation4 + $0x8] sm:$0xf]
    %v854 = vld [vmem:[#allocation4 + $0xc] sm:$0xf]
    %v855 = vld [vmem:[#allocation4 + $0x10] sm:$0xf]
    %v856 = vld [vmem:[#allocation4 + $0x14] sm:$0xf]
    %v857 = vld [vmem:[#allocation4 + $0x18] sm:$0xf]
    %v858 = vld [vmem:[#allocation4 + $0x1c] sm:$0xf]
    %v859 = vld [vmem:[#allocation4 + $0x20] sm:$0xf]
    %v860 = vld [vmem:[#allocation4 + $0x24] sm:$0xf]
    %v861 = vld [vmem:[#allocation4 + $0x28] sm:$0xf]
    %v862 = vld [vmem:[#allocation4 + $0x2c] sm:$0xf]
    %v863 = vld [vmem:[#allocation4 + $0x30] sm:$0xf]
    %v864 = vld [vmem:[#allocation4 + $0x34] sm:$0xf]
    %v865 = vld [vmem:[#allocation4 + $0x38] sm:$0xf]
    %v866 = vld [vmem:[#allocation4 + $0x3c] sm:$0xf]
    %v883 = vunpack.c.l.b16 %v851
    %v884 = vunpack.c.l.b16 %v852
    %v885 = vunpack.c.l.b16 %v853
    %v886 = vunpack.c.l.b16 %v854
    %v887 = vunpack.c.l.b16 %v855
    %v888 = vunpack.c.l.b16 %v856
    %v889 = vunpack.c.l.b16 %v857
    %v890 = vunpack.c.l.b16 %v858
    %v891 = vunpack.c.l.b16 %v859
    %v892 = vunpack.c.l.b16 %v860
    %v893 = vunpack.c.l.b16 %v861
    %v894 = vunpack.c.l.b16 %v862
    %v895 = vunpack.c.l.b16 %v863
    %v896 = vunpack.c.l.b16 %v864
    %v897 = vunpack.c.l.b16 %v865
    %v898 = vunpack.c.l.b16 %v866
    %v899 = vpack.c.b16 %v884, %v883
    %v900 = vpack.c.b16 %v886, %v885
    %v901 = vpack.c.b16 %v888, %v887
    %v902 = vpack.c.b16 %v890, %v889
    %v903 = vpack.c.b16 %v892, %v891
    %v904 = vpack.c.b16 %v894, %v893
    %v905 = vpack.c.b16 %v896, %v895
    %v906 = vpack.c.b16 %v898, %v897
    %915 = vmatprep.subr.bf16.mxu0 0
    %916 = vmatpush1.bf16.msra.mxu0 %v899
    %917 = vmatprep.subr.bf16.mxu0 0
    %918 = vmatpush1.bf16.msra.mxu0 %v900
    %919 = vmatprep.subr.bf16.mxu0 0
    %920 = vmatpush1.bf16.msra.mxu0 %v901
    %921 = vmatprep.subr.bf16.mxu0 0
    %922 = vmatpush1.bf16.msra.mxu0 %v902
    %923 = vmatprep.subr.bf16.mxu0 0
    %924 = vmatpush1.bf16.msra.mxu0 %v903
    %925 = vmatprep.subr.bf16.mxu0 0
    %926 = vmatpush1.bf16.msra.mxu0 %v904
    %927 = vmatprep.subr.bf16.mxu0 0
    %928 = vmatpush1.bf16.msra.mxu0 %v905
    %929 = vmatprep.subr.bf16.mxu0 0
    %930 = vmatpush1.bf16.msra.mxu0 %v906
    %931 = vmatprep.subr.bf16.mxu0 0
    %932 = vmatpush1.bf16.msra.mxu0 0
    %933 = vmatprep.subr.bf16.mxu0 0
    %934 = vmatpush1.bf16.msra.mxu0 0
    %935 = vmatprep.subr.bf16.mxu0 0
    %936 = vmatpush1.bf16.msra.mxu0 0
    %937 = vmatprep.subr.bf16.mxu0 0
    %938 = vmatpush1.bf16.msra.mxu0 0
    %939 = vmatprep.subr.bf16.mxu0 0
    %940 = vmatpush1.bf16.msra.mxu0 0
    %941 = vmatprep.subr.bf16.mxu0 0
    %942 = vmatpush1.bf16.msra.mxu0 0
    %943 = vmatprep.subr.bf16.mxu0 0
    %944 = vmatpush1.bf16.msra.mxu0 0
    %945 = vmatprep.subr.bf16.mxu0 0
    %946 = vmatpush1.bf16.msra.mxu0 0
    %947 = vmatprep.mubr.bf16.mxu0 0
    %948 = vmatmul.mubr.bf16.gmra.mrb[0].mxu0 %v847
    %v949 = vpop.f32.mrb[0].mxu0
    %v950 = vadd.f32 0.0, %v949
    %v951 = vpop.f32.mrb[0].mxu0
    %v952 = vpop.f32.mrb[0].mxu0
    %v953 = vadd.f32 0.0, %v952
    %v954 = vpop.f32.mrb[0].mxu0
    %955 = vmatprep.mubr.bf16.mxu0 0
    %956 = vmatmul.mubr.bf16.gmra.mrb[0].mxu0 %v848
    %v957 = vpop.f32.mrb[0].mxu0
    %v958 = vadd.f32 0.0, %v957
    %v959 = vpop.f32.mrb[0].mxu0
    %v960 = vpop.f32.mrb[0].mxu0
    %v961 = vadd.f32 0.0, %v960
    %v962 = vpop.f32.mrb[0].mxu0
    %963 = vmatprep.mubr.bf16.mxu0 0
    %964 = vmatmul.mubr.bf16.gmra.mrb[0].mxu0 %v849
    %v965 = vpop.f32.mrb[0].mxu0
    %v966 = vadd.f32 0.0, %v965
    %v967 = vpop.f32.mrb[0].mxu0
    %v968 = vpop.f32.mrb[0].mxu0
    %v969 = vadd.f32 0.0, %v968
    %v970 = vpop.f32.mrb[0].mxu0
    %971 = vmatprep.mubr.bf16.mxu0 0
    %972 = vmatmul.mubr.bf16.gmra.mrb[0].mxu0 %v850
    %v973 = vpop.f32.mrb[0].mxu0
    %v974 = vadd.f32 0.0, %v973
    %v975 = vpop.f32.mrb[0].mxu0
    %v976 = vpop.f32.mrb[0].mxu0
    %v977 = vadd.f32 0.0, %v976
    %v978 = vpop.f32.mrb[0].mxu0
    %979 = vdwg.mxu0
    %v980 = vadd.f32 %v52, %v950
    %v981 = vadd.f32 %v53, %v953
    %v982 = vadd.f32 %v54, %v958
    %v983 = vadd.f32 %v55, %v961
    %v984 = vadd.f32 %v56, %v966
    %v985 = vadd.f32 %v57, %v969
    %v986 = vadd.f32 %v58, %v974
    %v987 = vadd.f32 %v59, %v977
    %988 = vst [vmem:[%s6] sm:$0xff] %v980
    %989 = vst [vmem:[%s6 + $0x8] sm:$0xff] %v981
    %990 = vst [vmem:[%s6 + $0x10] sm:$0xff] %v982
    %991 = vst [vmem:[%s6 + $0x18] sm:$0xff] %v983
    %992 = vst [vmem:[%s6 + $0x20] sm:$0xff] %v984
    %993 = vst [vmem:[%s6 + $0x28] sm:$0xff] %v985
    %994 = vst [vmem:[%s6 + $0x30] sm:$0xff] %v986
    %995 = vst [vmem:[%s6 + $0x38] sm:$0xff] %v987
    // Predicated region
    $region34: #{forward.1} parent=1 // pred_check
      _
    $region35: #{forward.1} parent=1 // pred_check_branch
      %997 = sbr.rel (0) target = $region37
    $region36: #{forward.1} parent=1 // pred_region
      _
    $region37: #{forward.1} parent=1 // pred_fallthru
      _
    // Predicated region
    $region38: #{forward.1} parent=1 // pred_check
      _
    $region39: #{forward.1} parent=1 // pred_check_branch
      %999 = sbr.rel (0) target = $region41
    $region40: #{forward.1} parent=1 // pred_region
      _
    $region41: #{forward.1} parent=1 // pred_fallthru
      _
    %1000 = vsyncpa [#allocation3], 1
    %1001 = vsyncpa [#allocation5], 1

// kernel: forward.1
$region0: #{forward.1}
  #allocation0 [shape = 'u32[]', space=smem, size = 0x4, offset = 0x4, fixed_abs, tag = 'smem constant byte address 0x4 - core index']
  #allocation1 [shape = 'u32[144,128]{1,0:T(1,128)}', space=vmem, size = 0x12000, scoped, tag = 'internal scratch']
  %s0 = inlined_call_operand.vmem [shape: f32[64,128], index: 0, kind: input, shape index: {}]
  %s1 = inlined_call_operand.hbm [shape: bf16[128,256], index: 1, kind: input, shape index: {}]
  %s2 = inlined_call_operand.hbm [shape: bf16[128,128], index: 2, kind: input, shape index: {}]
  %s3 = inlined_call_operand.vmem [shape: f32[80,128], index: 3, kind: input, shape index: {}]
  %s4 = inlined_call_operand.vmem [shape: f32[1,128], index: 4, kind: input, shape index: {}]
  %s5 = inlined_call_operand.vmem [shape: f32[1,128], index: 5, kind: input, shape index: {}]
  %s6 = inlined_call_operand.vmem [shape: f32[64,128], index: 6, kind: output, shape index: {}]
  %s7 = sld [smem:[#allocation0]]
  $region42: #{forward.1} parent=0
    _
  %s9 = ssub.s32 1, %s7
  %s10 = scalar_select 0, %s9, %s7
  $region1: #{forward.1} parent=0
    #allocation2 [shape = 'u8[65536]{0}', space=vmem, size = 0x10000, scoped, tag = 'input window, operand 1, single buffered']
    #allocation3 [shape = 's32[1]{0}', space=sflag, size = 0x4, scoped, tag = 'scoped memory for forward.1']
    #allocation4 [shape = 'u8[32768]{0}', space=vmem, size = 0x8000, scoped, tag = 'input window, operand 2, single buffered']
    #allocation5 [shape = 's32[1]{0}', space=sflag, size = 0x4, scoped, tag = 'scoped memory for forward.1']
    %11 = vsyncpa [#allocation3], 0
    %12 = vsyncpa [#allocation5], 0
    // Predicated region
    $region2: #{forward.1} parent=1 // pred_check
      _
    $region3: #{forward.1} parent=1 // pred_check_branch
      %14 = sbr.rel (0) target = $region5
    $region4: #{forward.1} parent=1 // pred_region
      _
    $region5: #{forward.1} parent=1 // pred_fallthru
      _
    // Predicated region
    $region6: #{forward.1} parent=1 // pred_check
      _
    $region7: #{forward.1} parent=1 // pred_check_branch
      %16 = sbr.rel (0) target = $region9
    $region8: #{forward.1} parent=1 // pred_region
      %s18 = ssub.s32 2048, 2048
      %19 = vsyncadd [#allocation3], %s18
      %s20 = sshll.u32 [#allocation2], 4
      %s21 = int_to_ptr.vmem [resolvable:$true] %s20
      %26 = dma.hbm_to_vmem [thread:$0]  %s1, 2048, %s21, [#allocation3], 128, 128, 8
    $region9: #{forward.1} parent=1 // pred_fallthru
      _
    // Predicated region
    $region10: #{forward.1} parent=1 // pred_check
      _
    $region11: #{forward.1} parent=1 // pred_check_branch
      %28 = sbr.rel (0) target = $region13
    $region12: #{forward.1} parent=1 // pred_region
      %s30 = ssub.s32 1024, 1024
      %31 = vsyncadd [#allocation5], %s30
      %s32 = sshll.u32 [#allocation4], 4
      %s33 = int_to_ptr.vmem [resolvable:$true] %s32
      %38 = dma.hbm_to_vmem [thread:$0]  %s2, 1024, %s33, [#allocation5], 64, 64, 4
    $region13: #{forward.1} parent=1 // pred_fallthru
      _
    // Predicated region
    $region14: #{forward.1} parent=1 // pred_check
      _
    $region15: #{forward.1} parent=1 // pred_check_branch
      %40 = sbr.rel (0) target = $region17
    $region16: #{forward.1} parent=1 // pred_region
      _
    $region17: #{forward.1} parent=1 // pred_fallthru
      _
    // Predicated region
    $region18: #{forward.1} parent=1 // pred_check
      _
    $region19: #{forward.1} parent=1 // pred_check_branch
      %42 = sbr.rel (0) target = $region21
    $region20: #{forward.1} parent=1 // pred_region
      _
    $region21: #{forward.1} parent=1 // pred_fallthru
      _
    // Predicated region
    $region22: #{forward.1} parent=1 // pred_check
      _
    $region23: #{forward.1} parent=1 // pred_check_branch
      %44 = sbr.rel (0) target = $region25
    $region24: #{forward.1} parent=1 // pred_region
      _
    $region25: #{forward.1} parent=1 // pred_fallthru
      _
    // Predicated region
    $region26: #{forward.1} parent=1 // pred_check
      _
    $region27: #{forward.1} parent=1 // pred_check_branch
      %46 = sbr.rel (0) target = $region29
    $region28: #{forward.1} parent=1 // pred_region
      %47 = dma.done [#allocation3], 2048
    $region29: #{forward.1} parent=1 // pred_fallthru
      _
    // Predicated region
    $region30: #{forward.1} parent=1 // pred_check
      _
    $region31: #{forward.1} parent=1 // pred_check_branch
      %49 = sbr.rel (0) target = $region33
    $region32: #{forward.1} parent=1 // pred_region
      %50 = dma.done [#allocation5], 1024
    $region33: #{forward.1} parent=1 // pred_fallthru
      _
    %v52 = vld [vmem:[%s0] sm:$0xff]
    %v53 = vld [vmem:[%s0 + $0x8] sm:$0xff]
    %v54 = vld [vmem:[%s0 + $0x10] sm:$0xff]
    %v55 = vld [vmem:[%s0 + $0x18] sm:$0xff]
    %v56 = vld [vmem:[%s0 + $0x20] sm:$0xff]
    %v57 = vld [vmem:[%s0 + $0x28] sm:$0xff]
    %v58 = vld [vmem:[%s0 + $0x30] sm:$0xff]
    %v59 = vld [vmem:[%s0 + $0x38] sm:$0xff]
    %v60 = vpack.c.bf16 %v53, %v52
    %v61 = vpack.c.bf16 %v55, %v54
    %v62 = vpack.c.bf16 %v57, %v56
    %v63 = vpack.c.bf16 %v59, %v58
    %v64 = vld [vmem:[#allocation2] sm:$0xff]
    %v65 = vld [vmem:[#allocation2 + $0x8] sm:$0xff]
    %v66 = vld [vmem:[#allocation2 + $0x10] sm:$0xff]
    %v67 = vld [vmem:[#allocation2 + $0x18] sm:$0xff]
    %v68 = vld [vmem:[#allocation2 + $0x20] sm:$0xff]
    %v69 = vld [vmem:[#allocation2 + $0x28] sm:$0xff]
    %v70 = vld [vmem:[#allocation2 + $0x30] sm:$0xff]
    %v71 = vld [vmem:[#allocation2 + $0x38] sm:$0xff]
    %v72 = vld [vmem:[#allocation2 + $0x40] sm:$0xff]
    %v73 = vld [vmem:[#allocation2 + $0x48] sm:$0xff]
    %v74 = vld [vmem:[#allocation2 + $0x50] sm:$0xff]
    %v75 = vld [vmem:[#allocation2 + $0x58] sm:$0xff]
    %v76 = vld [vmem:[#allocation2 + $0x60] sm:$0xff]
    %v77 = vld [vmem:[#allocation2 + $0x68] sm:$0xff]
    %v78 = vld [vmem:[#allocation2 + $0x70] sm:$0xff]
    %v79 = vld [vmem:[#allocation2 + $0x78] sm:$0xff]
    %v96 = vunpack.c.l.b16 %v64
    %v97 = vunpack.c.h.b16 %v64
    %v98 = vunpack.c.l.b16 %v65
    %v99 = vunpack.c.h.b16 %v65
    %v100 = vunpack.c.l.b16 %v66
    %v101 = vunpack.c.h.b16 %v66
    %v102 = vunpack.c.l.b16 %v67
    %v103 = vunpack.c.h.b16 %v67
    %v104 = vunpack.c.l.b16 %v68
    %v105 = vunpack.c.h.b16 %v68
    %v106 = vunpack.c.l.b16 %v69
    %v107 = vunpack.c.h.b16 %v69
    %v108 = vunpack.c.l.b16 %v70
    %v109 = vunpack.c.h.b16 %v70
    %v110 = vunpack.c.l.b16 %v71
    %v111 = vunpack.c.h.b16 %v71
    %v112 = vunpack.c.l.b16 %v72
    %v113 = vunpack.c.h.b16 %v72
    %v114 = vunpack.c.l.b16 %v73
    %v115 = vunpack.c.h.b16 %v73
    %v116 = vunpack.c.l.b16 %v74
    %v117 = vunpack.c.h.b16 %v74
    %v118 = vunpack.c.l.b16 %v75
    %v119 = vunpack.c.h.b16 %v75
    %v120 = vunpack.c.l.b16 %v76
    %v121 = vunpack.c.h.b16 %v76
    %v122 = vunpack.c.l.b16 %v77
    %v123 = vunpack.c.h.b16 %v77
    %v124 = vunpack.c.l.b16 %v78
    %v125 = vunpack.c.h.b16 %v78
    %v126 = vunpack.c.l.b16 %v79
    %v127 = vunpack.c.h.b16 %v79
    %v128 = vpack.c.b16 %v98, %v96
    %v129 = vpack.c.b16 %v99, %v97
    %v130 = vpack.c.b16 %v102, %v100
    %v131 = vpack.c.b16 %v103, %v101
    %v132 = vpack.c.b16 %v106, %v104
    %v133 = vpack.c.b16 %v107, %v105
    %v134 = vpack.c.b16 %v110, %v108
    %v135 = vpack.c.b16 %v111, %v109
    %v136 = vpack.c.b16 %v114, %v112
    %v137 = vpack.c.b16 %v115, %v113
    %v138 = vpack.c.b16 %v118, %v116
    %v139 = vpack.c.b16 %v119, %v117
    %v140 = vpack.c.b16 %v122, %v120
    %v141 = vpack.c.b16 %v123, %v121
    %v142 = vpack.c.b16 %v126, %v124
    %v143 = vpack.c.b16 %v127, %v125
    %160 = vmatprep.subr.bf16.mxu0 %v129
    %161 = vmatpush1.bf16.msra.mxu0 %v128
    %162 = vmatprep.subr.bf16.mxu0 %v131
    %163 = vmatpush1.bf16.msra.mxu0 %v130
    %164 = vmatprep.subr.bf16.mxu0 %v133
    %165 = vmatpush1.bf16.msra.mxu0 %v132
    %166 = vmatprep.subr.bf16.mxu0 %v135
    %167 = vmatpush1.bf16.msra.mxu0 %v134
    %168 = vmatprep.subr.bf16.mxu0 %v137
    %169 = vmatpush1.bf16.msra.mxu0 %v136
    %170 = vmatprep.subr.bf16.mxu0 %v139
    %171 = vmatpush1.bf16.msra.mxu0 %v138
    %172 = vmatprep.subr.bf16.mxu0 %v141
    %173 = vmatpush1.bf16.msra.mxu0 %v140
    %174 = vmatprep.subr.bf16.mxu0 %v143
    %175 = vmatpush1.bf16.msra.mxu0 %v142
    %176 = vmatprep.subr.bf16.mxu0 0
    %177 = vmatpush1.bf16.msra.mxu0 0
    %178 = vmatprep.subr.bf16.mxu0 0
    %179 = vmatpush1.bf16.msra.mxu0 0
    %180 = vmatprep.subr.bf16.mxu0 0
    %181 = vmatpush1.bf16.msra.mxu0 0
    %182 = vmatprep.subr.bf16.mxu0 0
    %183 = vmatpush1.bf16.msra.mxu0 0
    %184 = vmatprep.subr.bf16.mxu0 0
    %185 = vmatpush1.bf16.msra.mxu0 0
    %186 = vmatprep.subr.bf16.mxu0 0
    %187 = vmatpush1.bf16.msra.mxu0 0
    %188 = vmatprep.subr.bf16.mxu0 0
    %189 = vmatpush1.bf16.msra.mxu0 0
    %190 = vmatprep.subr.bf16.mxu0 0
    %191 = vmatpush1.bf16.msra.mxu0 0
    %192 = vmatprep.mubr.bf16.mxu0 0
    %193 = vmatmul.mubr.bf16.gmra.mrb[0].mxu0 %v60
    %v194 = vpop.f32.mrb[0].mxu0
    %v195 = vadd.f32 0.0, %v194
    %v196 = vpop.f32.mrb[0].mxu0
    %v197 = vadd.f32 0.0, %v196
    %v198 = vpop.f32.mrb[0].mxu0
    %v199 = vadd.f32 0.0, %v198
    %v200 = vpop.f32.mrb[0].mxu0
    %v201 = vadd.f32 0.0, %v200
    %202 = vmatprep.mubr.bf16.mxu0 0
    %203 = vmatmul.mubr.bf16.gmra.mrb[0].mxu0 %v61
    %v204 = vpop.f32.mrb[0].mxu0
    %v205 = vadd.f32 0.0, %v204
    %v206 = vpop.f32.mrb[0].mxu0
    %v207 = vadd.f32 0.0, %v206
    %v208 = vpop.f32.mrb[0].mxu0
    %v209 = vadd.f32 0.0, %v208
    %v210 = vpop.f32.mrb[0].mxu0
    %v211 = vadd.f32 0.0, %v210
    %212 = vmatprep.mubr.bf16.mxu0 0
    %213 = vmatmul.mubr.bf16.gmra.mrb[0].mxu0 %v62
    %v214 = vpop.f32.mrb[0].mxu0
    %v215 = vadd.f32 0.0, %v214
    %v216 = vpop.f32.mrb[0].mxu0
    %v217 = vadd.f32 0.0, %v216
    %v218 = vpop.f32.mrb[0].mxu0
    %v219 = vadd.f32 0.0, %v218
    %v220 = vpop.f32.mrb[0].mxu0
    %v221 = vadd.f32 0.0, %v220
    %222 = vmatprep.mubr.bf16.mxu0 0
    %223 = vmatmul.mubr.bf16.gmra.mrb[0].mxu0 %v63
    %v224 = vpop.f32.mrb[0].mxu0
    %v225 = vadd.f32 0.0, %v224
    %v226 = vpop.f32.mrb[0].mxu0
    %v227 = vadd.f32 0.0, %v226
    %v228 = vpop.f32.mrb[0].mxu0
    %v229 = vadd.f32 0.0, %v228
    %v230 = vpop.f32.mrb[0].mxu0
    %v231 = vadd.f32 0.0, %v230
    %232 = vdwg.mxu0
    %v233 = vxor.u32 %v197, 2147483648
    %v234 = vxor.u32 %v201, 2147483648
    %v235 = vxor.u32 %v207, 2147483648
    %v236 = vxor.u32 %v211, 2147483648
    %v237 = vxor.u32 %v217, 2147483648
    %v238 = vxor.u32 %v221, 2147483648
    %v239 = vxor.u32 %v227, 2147483648
    %v240 = vxor.u32 %v231, 2147483648
    %v241 = vmul.f32 %v233, 1.442695
    %v242 = vpow.pop %v241
    %v243 = vmul.f32 %v234, 1.442695
    %v244 = vpow.pop %v243
    %v245 = vmul.f32 %v235, 1.442695
    %v246 = vpow.pop %v245
    %v247 = vmul.f32 %v236, 1.442695
    %v248 = vpow.pop %v247
    %v249 = vmul.f32 %v237, 1.442695
    %v250 = vpow.pop %v249
    %v251 = vmul.f32 %v238, 1.442695
    %v252 = vpow.pop %v251
    %v253 = vmul.f32 %v239, 1.442695
    %v254 = vpow.pop %v253
    %v255 = vmul.f32 %v240, 1.442695
    %v256 = vpow.pop %v255
    %v257 = vadd.f32 %v242, 1.0
    %v258 = vadd.f32 %v244, 1.0
    %v259 = vadd.f32 %v246, 1.0
    %v260 = vadd.f32 %v248, 1.0
    %v261 = vadd.f32 %v250, 1.0
    %v262 = vadd.f32 %v252, 1.0
    %v263 = vadd.f32 %v254, 1.0
    %v264 = vadd.f32 %v256, 1.0
    %v265 = vrcp.pop %v257
    %v266 = vmul.f32 1.0, %v265
    %v267 = vrcp.pop %v258
    %v268 = vmul.f32 1.0, %v267
    %v269 = vrcp.pop %v259
    %v270 = vmul.f32 1.0, %v269
    %v271 = vrcp.pop %v260
    %v272 = vmul.f32 1.0, %v271
    %v273 = vrcp.pop %v261
    %v274 = vmul.f32 1.0, %v273
    %v275 = vrcp.pop %v262
    %v276 = vmul.f32 1.0, %v275
    %v277 = vrcp.pop %v263
    %v278 = vmul.f32 1.0, %v277
    %v279 = vrcp.pop %v264
    %v280 = vmul.f32 1.0, %v279
    %v281 = vmul.f32 %v195, %v266
    %v282 = vmul.f32 %v199, %v268
    %v283 = vmul.f32 %v205, %v270
    %v284 = vmul.f32 %v209, %v272
    %v285 = vmul.f32 %v215, %v274
    %v286 = vmul.f32 %v219, %v276
    %v287 = vmul.f32 %v225, %v278
    %v288 = vmul.f32 %v229, %v280
    %v289 = vld [vmem:[%s3] sm:$0xff]
    %v290 = vld [vmem:[%s3 + $0x8] sm:$0xff]
    %v291 = vlaneseq
    %v292 = vshrl.u32 %v291, 7
    %v293 = vsub.s32 7, %v292
    %v294 = vrot.slane %v289, %v293
    %v295 = vmul.f32 %v281, %v294
    %v296 = vmul.f32 %v282, %v294
    %v297 = vmul.f32 %v283, %v294
    %v298 = vmul.f32 %v284, %v294
    %v299 = vmul.f32 %v285, %v294
    %v300 = vmul.f32 %v286, %v294
    %v301 = vmul.f32 %v287, %v294
    %v302 = vmul.f32 %v288, %v294
    %v303 = vrot.slane %v281, 1
    %v304 = vrot.slane %v282, 1
    %v305 = vrot.slane %v283, 1
    %v306 = vrot.slane %v284, 1
    %v307 = vrot.slane %v285, 1
    %v308 = vrot.slane %v286, 1
    %v309 = vrot.slane %v287, 1
    %v310 = vrot.slane %v288, 1
    %v311 = vlaneseq
    %v312 = vshrl.u32 %v311, 7
    %vm313 = vcmp.lt.s32.totalorder %v312, 7
    %v314 = vsel %vm313, %v309, %v310
    %v315 = vsel %vm313, %v308, %v309
    %v316 = vsel %vm313, %v307, %v308
    %v317 = vsel %vm313, %v306, %v307
    %v318 = vsel %vm313, %v305, %v306
    %v319 = vsel %vm313, %v304, %v305
    %v320 = vsel %vm313, %v303, %v304
    %v321 = vsel %vm313, %v310, %v303
    %v322 = vlaneseq
    %v323 = vshrl.u32 %v322, 7
    %v324 = vsub.s32 0, %v323
    %v325 = vrot.slane %v289, %v324
    %v326 = vmul.f32 %v321, %v325
    %v327 = vmul.f32 %v320, %v325
    %v328 = vmul.f32 %v319, %v325
    %v329 = vmul.f32 %v318, %v325
    %v330 = vmul.f32 %v317, %v325
    %v331 = vmul.f32 %v316, %v325
    %v332 = vmul.f32 %v315, %v325
    %v333 = vmul.f32 %v314, %v325
    %v334 = vadd.f32 %v295, %v326
    %v335 = vadd.f32 %v296, %v327
    %v336 = vadd.f32 %v297, %v328
    %v337 = vadd.f32 %v298, %v329
    %v338 = vadd.f32 %v299, %v330
    %v339 = vadd.f32 %v300, %v331
    %v340 = vadd.f32 %v301, %v332
    %v341 = vadd.f32 %v302, %v333
    %v342 = vrot.slane %v281, 2
    %v343 = vrot.slane %v282, 2
    %v344 = vrot.slane %v283, 2
    %v345 = vrot.slane %v284, 2
    %v346 = vrot.slane %v285, 2
    %v347 = vrot.slane %v286, 2
    %v348 = vrot.slane %v287, 2
    %v349 = vrot.slane %v288, 2
    %vm350 = vcmp.lt.s32.totalorder %v312, 6
    %v351 = vsel %vm350, %v348, %v349
    %v352 = vsel %vm350, %v347, %v348
    %v353 = vsel %vm350, %v346, %v347
    %v354 = vsel %vm350, %v345, %v346
    %v355 = vsel %vm350, %v344, %v345
    %v356 = vsel %vm350, %v343, %v344
    %v357 = vsel %vm350, %v342, %v343
    %v358 = vsel %vm350, %v349, %v342
    %v359 = vlaneseq
    %v360 = vshrl.u32 %v359, 7
    %v361 = vsub.s32 1, %v360
    %v362 = vrot.slane %v289, %v361
    %v363 = vmul.f32 %v358, %v362
    %v364 = vmul.f32 %v357, %v362
    %v365 = vmul.f32 %v356, %v362
    %v366 = vmul.f32 %v355, %v362
    %v367 = vmul.f32 %v354, %v362
    %v368 = vmul.f32 %v353, %v362
    %v369 = vmul.f32 %v352, %v362
    %v370 = vmul.f32 %v351, %v362
    %v371 = vadd.f32 %v334, %v363
    %v372 = vadd.f32 %v335, %v364
    %v373 = vadd.f32 %v336, %v365
    %v374 = vadd.f32 %v337, %v366
    %v375 = vadd.f32 %v338, %v367
    %v376 = vadd.f32 %v339, %v368
    %v377 = vadd.f32 %v340, %v369
    %v378 = vadd.f32 %v341, %v370
    %v379 = vrot.slane %v281, 3
    %v380 = vrot.slane %v282, 3
    %v381 = vrot.slane %v283, 3
    %v382 = vrot.slane %v284, 3
    %v383 = vrot.slane %v285, 3
    %v384 = vrot.slane %v286, 3
    %v385 = vrot.slane %v287, 3
    %v386 = vrot.slane %v288, 3
    %vm387 = vcmp.lt.s32.totalorder %v312, 5
    %v388 = vsel %vm387, %v385, %v386
    %v389 = vsel %vm387, %v384, %v385
    %v390 = vsel %vm387, %v383, %v384
    %v391 = vsel %vm387, %v382, %v383
    %v392 = vsel %vm387, %v381, %v382
    %v393 = vsel %vm387, %v380, %v381
    %v394 = vsel %vm387, %v379, %v380
    %v395 = vsel %vm387, %v386, %v379
    %v396 = vlaneseq
    %v397 = vshrl.u32 %v396, 7
    %v398 = vsub.s32 2, %v397
    %v399 = vrot.slane %v289, %v398
    %v400 = vmul.f32 %v395, %v399
    %v401 = vmul.f32 %v394, %v399
    %v402 = vmul.f32 %v393, %v399
    %v403 = vmul.f32 %v392, %v399
    %v404 = vmul.f32 %v391, %v399
    %v405 = vmul.f32 %v390, %v399
    %v406 = vmul.f32 %v389, %v399
    %v407 = vmul.f32 %v388, %v399
    %v408 = vadd.f32 %v371, %v400
    %v409 = vadd.f32 %v372, %v401
    %v410 = vadd.f32 %v373, %v402
    %v411 = vadd.f32 %v374, %v403
    %v412 = vadd.f32 %v375, %v404
    %v413 = vadd.f32 %v376, %v405
    %v414 = vadd.f32 %v377, %v406
    %v415 = vadd.f32 %v378, %v407
    %v416 = vrot.slane %v281, 4
    %v417 = vrot.slane %v282, 4
    %v418 = vrot.slane %v283, 4
    %v419 = vrot.slane %v284, 4
    %v420 = vrot.slane %v285, 4
    %v421 = vrot.slane %v286, 4
    %v422 = vrot.slane %v287, 4
    %v423 = vrot.slane %v288, 4
    %vm424 = vcmp.lt.s32.totalorder %v312, 4
    %v425 = vsel %vm424, %v422, %v423
    %v426 = vsel %vm424, %v421, %v422
    %v427 = vsel %vm424, %v420, %v421
    %v428 = vsel %vm424, %v419, %v420
    %v429 = vsel %vm424, %v418, %v419
    %v430 = vsel %vm424, %v417, %v418
    %v431 = vsel %vm424, %v416, %v417
    %v432 = vsel %vm424, %v423, %v416
    %v433 = vlaneseq
    %v434 = vshrl.u32 %v433, 7
    %v435 = vsub.s32 3, %v434
    %v436 = vrot.slane %v289, %v435
    %v437 = vmul.f32 %v432, %v436
    %v438 = vmul.f32 %v431, %v436
    %v439 = vmul.f32 %v430, %v436
    %v440 = vmul.f32 %v429, %v436
    %v441 = vmul.f32 %v428, %v436
    %v442 = vmul.f32 %v427, %v436
    %v443 = vmul.f32 %v426, %v436
    %v444 = vmul.f32 %v425, %v436
    %v445 = vadd.f32 %v408, %v437
    %v446 = vadd.f32 %v409, %v438
    %v447 = vadd.f32 %v410, %v439
    %v448 = vadd.f32 %v411, %v440
    %v449 = vadd.f32 %v412, %v441
    %v450 = vadd.f32 %v413, %v442
    %v451 = vadd.f32 %v414, %v443
    %v452 = vadd.f32 %v415, %v444
    %v453 = vrot.slane %v281, 5
    %v454 = vrot.slane %v282, 5
    %v455 = vrot.slane %v283, 5
    %v456 = vrot.slane %v284, 5
    %v457 = vrot.slane %v285, 5
    %v458 = vrot.slane %v286, 5
    %v459 = vrot.slane %v287, 5
    %v460 = vrot.slane %v288, 5
    %vm461 = vcmp.lt.s32.totalorder %v312, 3
    %v462 = vsel %vm461, %v459, %v460
    %v463 = vsel %vm461, %v458, %v459
    %v464 = vsel %vm461, %v457, %v458
    %v465 = vsel %vm461, %v456, %v457
    %v466 = vsel %vm461, %v455, %v456
    %v467 = vsel %vm461, %v454, %v455
    %v468 = vsel %vm461, %v453, %v454
    %v469 = vsel %vm461, %v460, %v453
    %v470 = vlaneseq
    %v471 = vshrl.u32 %v470, 7
    %v472 = vsub.s32 4, %v471
    %v473 = vrot.slane %v289, %v472
    %v474 = vmul.f32 %v469, %v473
    %v475 = vmul.f32 %v468, %v473
    %v476 = vmul.f32 %v467, %v473
    %v477 = vmul.f32 %v466, %v473
    %v478 = vmul.f32 %v465, %v473
    %v479 = vmul.f32 %v464, %v473
    %v480 = vmul.f32 %v463, %v473
    %v481 = vmul.f32 %v462, %v473
    %v482 = vadd.f32 %v445, %v474
    %v483 = vadd.f32 %v446, %v475
    %v484 = vadd.f32 %v447, %v476
    %v485 = vadd.f32 %v448, %v477
    %v486 = vadd.f32 %v449, %v478
    %v487 = vadd.f32 %v450, %v479
    %v488 = vadd.f32 %v451, %v480
    %v489 = vadd.f32 %v452, %v481
    %v490 = vrot.slane %v281, 6
    %v491 = vrot.slane %v282, 6
    %v492 = vrot.slane %v283, 6
    %v493 = vrot.slane %v284, 6
    %v494 = vrot.slane %v285, 6
    %v495 = vrot.slane %v286, 6
    %v496 = vrot.slane %v287, 6
    %v497 = vrot.slane %v288, 6
    %vm498 = vcmp.lt.s32.totalorder %v312, 2
    %v499 = vsel %vm498, %v496, %v497
    %v500 = vsel %vm498, %v495, %v496
    %v501 = vsel %vm498, %v494, %v495
    %v502 = vsel %vm498, %v493, %v494
    %v503 = vsel %vm498, %v492, %v493
    %v504 = vsel %vm498, %v491, %v492
    %v505 = vsel %vm498, %v490, %v491
    %v506 = vsel %vm498, %v497, %v490
    %v507 = vlaneseq
    %v508 = vshrl.u32 %v507, 7
    %v509 = vsub.s32 5, %v508
    %v510 = vrot.slane %v289, %v509
    %v511 = vmul.f32 %v506, %v510
    %v512 = vmul.f32 %v505, %v510
    %v513 = vmul.f32 %v504, %v510
    %v514 = vmul.f32 %v503, %v510
    %v515 = vmul.f32 %v502, %v510
    %v516 = vmul.f32 %v501, %v510
    %v517 = vmul.f32 %v500, %v510
    %v518 = vmul.f32 %v499, %v510
    %v519 = vadd.f32 %v482, %v511
    %v520 = vadd.f32 %v483, %v512
    %v521 = vadd.f32 %v484, %v513
    %v522 = vadd.f32 %v485, %v514
    %v523 = vadd.f32 %v486, %v515
    %v524 = vadd.f32 %v487, %v516
    %v525 = vadd.f32 %v488, %v517
    %v526 = vadd.f32 %v489, %v518
    %v527 = vrot.slane %v281, 7
    %v528 = vrot.slane %v282, 7
    %v529 = vrot.slane %v283, 7
    %v530 = vrot.slane %v284, 7
    %v531 = vrot.slane %v285, 7
    %v532 = vrot.slane %v286, 7
    %v533 = vrot.slane %v287, 7
    %v534 = vrot.slane %v288, 7
    %vm535 = vcmp.lt.s32.totalorder %v312, 1
    %v536 = vsel %vm535, %v533, %v534
    %v537 = vsel %vm535, %v532, %v533
    %v538 = vsel %vm535, %v531, %v532
    %v539 = vsel %vm535, %v530, %v531
    %v540 = vsel %vm535, %v529, %v530
    %v541 = vsel %vm535, %v528, %v529
    %v542 = vsel %vm535, %v527, %v528
    %v543 = vsel %vm535, %v534, %v527
    %v544 = vlaneseq
    %v545 = vshrl.u32 %v544, 7
    %v546 = vsub.s32 6, %v545
    %v547 = vrot.slane %v289, %v546
    %v548 = vmul.f32 %v543, %v547
    %v549 = vmul.f32 %v542, %v547
    %v550 = vmul.f32 %v541, %v547
    %v551 = vmul.f32 %v540, %v547
    %v552 = vmul.f32 %v539, %v547
    %v553 = vmul.f32 %v538, %v547
    %v554 = vmul.f32 %v537, %v547
    %v555 = vmul.f32 %v536, %v547
    %v556 = vadd.f32 %v519, %v548
    %v557 = vadd.f32 %v520, %v549
    %v558 = vadd.f32 %v521, %v550
    %v559 = vadd.f32 %v522, %v551
    %v560 = vadd.f32 %v523, %v552
    %v561 = vadd.f32 %v524, %v553
    %v562 = vadd.f32 %v525, %v554
    %v563 = vadd.f32 %v526, %v555
    %v564 = vlaneseq
    %v565 = vshrl.u32 %v564, 7
    %v566 = vsub.s32 0, %v565
    %v567 = vrot.slane %v290, %v566
    %v568 = vmul.f32 %v320, %v567
    %v569 = vmul.f32 %v319, %v567
    %v570 = vmul.f32 %v318, %v567
    %v571 = vmul.f32 %v317, %v567
    %v572 = vmul.f32 %v316, %v567
    %v573 = vmul.f32 %v315, %v567
    %v574 = vmul.f32 %v314, %v567
    %v575 = vmul.f32 %v321, %v567
    %v576 = vadd.f32 %v556, %v568
    %v577 = vadd.f32 %v557, %v569
    %v578 = vadd.f32 %v558, %v570
    %v579 = vadd.f32 %v559, %v571
    %v580 = vadd.f32 %v560, %v572
    %v581 = vadd.f32 %v561, %v573
    %v582 = vadd.f32 %v562, %v574
    %v583 = vadd.f32 %v563, %v575
    %v584 = vlaneseq
    %v585 = vshrl.u32 %v584, 7
    %v586 = vsub.s32 1, %v585
    %v587 = vrot.slane %v290, %v586
    %v588 = vmul.f32 %v357, %v587
    %v589 = vmul.f32 %v356, %v587
    %v590 = vmul.f32 %v355, %v587
    %v591 = vmul.f32 %v354, %v587
    %v592 = vmul.f32 %v353, %v587
    %v593 = vmul.f32 %v352, %v587
    %v594 = vmul.f32 %v351, %v587
    %v595 = vmul.f32 %v358, %v587
    %v596 = vadd.f32 %v576, %v588
    %v597 = vadd.f32 %v577, %v589
    %v598 = vadd.f32 %v578, %v590
    %v599 = vadd.f32 %v579, %v591
    %v600 = vadd.f32 %v580, %v592
    %v601 = vadd.f32 %v581, %v593
    %v602 = vadd.f32 %v582, %v594
    %v603 = vadd.f32 %v583, %v595
    %v604 = vlaneseq
    %v605 = vshrl.u32 %v604, 7
    %v606 = vsub.s32 2, %v605
    %v607 = vrot.slane %v290, %v606
    %v608 = vmul.f32 %v394, %v607
    %v609 = vmul.f32 %v393, %v607
    %v610 = vmul.f32 %v392, %v607
    %v611 = vmul.f32 %v391, %v607
    %v612 = vmul.f32 %v390, %v607
    %v613 = vmul.f32 %v389, %v607
    %v614 = vmul.f32 %v388, %v607
    %v615 = vmul.f32 %v395, %v607
    %v616 = vadd.f32 %v596, %v608
    %v617 = vadd.f32 %v597, %v609
    %v618 = vadd.f32 %v598, %v610
    %v619 = vadd.f32 %v599, %v611
    %v620 = vadd.f32 %v600, %v612
    %v621 = vadd.f32 %v601, %v613
    %v622 = vadd.f32 %v602, %v614
    %v623 = vadd.f32 %v603, %v615
    %v624 = vlaneseq
    %v625 = vshrl.u32 %v624, 7
    %v626 = vsub.s32 3, %v625
    %v627 = vrot.slane %v290, %v626
    %v628 = vmul.f32 %v431, %v627
    %v629 = vmul.f32 %v430, %v627
    %v630 = vmul.f32 %v429, %v627
    %v631 = vmul.f32 %v428, %v627
    %v632 = vmul.f32 %v427, %v627
    %v633 = vmul.f32 %v426, %v627
    %v634 = vmul.f32 %v425, %v627
    %v635 = vmul.f32 %v432, %v627
    %v636 = vadd.f32 %v616, %v628
    %v637 = vadd.f32 %v617, %v629
    %v638 = vadd.f32 %v618, %v630
    %v639 = vadd.f32 %v619, %v631
    %v640 = vadd.f32 %v620, %v632
    %v641 = vadd.f32 %v621, %v633
    %v642 = vadd.f32 %v622, %v634
    %v643 = vadd.f32 %v623, %v635
    %v644 = vlaneseq
    %v645 = vshrl.u32 %v644, 7
    %v646 = vsub.s32 4, %v645
    %v647 = vrot.slane %v290, %v646
    %v648 = vmul.f32 %v468, %v647
    %v649 = vmul.f32 %v467, %v647
    %v650 = vmul.f32 %v466, %v647
    %v651 = vmul.f32 %v465, %v647
    %v652 = vmul.f32 %v464, %v647
    %v653 = vmul.f32 %v463, %v647
    %v654 = vmul.f32 %v462, %v647
    %v655 = vmul.f32 %v469, %v647
    %v656 = vadd.f32 %v636, %v648
    %v657 = vadd.f32 %v637, %v649
    %v658 = vadd.f32 %v638, %v650
    %v659 = vadd.f32 %v639, %v651
    %v660 = vadd.f32 %v640, %v652
    %v661 = vadd.f32 %v641, %v653
    %v662 = vadd.f32 %v642, %v654
    %v663 = vadd.f32 %v643, %v655
    %v664 = vlaneseq
    %v665 = vshrl.u32 %v664, 7
    %v666 = vsub.s32 5, %v665
    %v667 = vrot.slane %v290, %v666
    %v668 = vmul.f32 %v505, %v667
    %v669 = vmul.f32 %v504, %v667
    %v670 = vmul.f32 %v503, %v667
    %v671 = vmul.f32 %v502, %v667
    %v672 = vmul.f32 %v501, %v667
    %v673 = vmul.f32 %v500, %v667
    %v674 = vmul.f32 %v499, %v667
    %v675 = vmul.f32 %v506, %v667
    %v676 = vadd.f32 %v656, %v668
    %v677 = vadd.f32 %v657, %v669
    %v678 = vadd.f32 %v658, %v670
    %v679 = vadd.f32 %v659, %v671
    %v680 = vadd.f32 %v660, %v672
    %v681 = vadd.f32 %v661, %v673
    %v682 = vadd.f32 %v662, %v674
    %v683 = vadd.f32 %v663, %v675
    %v684 = vlaneseq
    %v685 = vshrl.u32 %v684, 7
    %v686 = vsub.s32 6, %v685
    %v687 = vrot.slane %v290, %v686
    %v688 = vmul.f32 %v542, %v687
    %v689 = vmul.f32 %v541, %v687
    %v690 = vmul.f32 %v540, %v687
    %v691 = vmul.f32 %v539, %v687
    %v692 = vmul.f32 %v538, %v687
    %v693 = vmul.f32 %v537, %v687
    %v694 = vmul.f32 %v536, %v687
    %v695 = vmul.f32 %v543, %v687
    %v696 = vadd.f32 %v676, %v688
    %v697 = vadd.f32 %v677, %v689
    %v698 = vadd.f32 %v678, %v690
    %v699 = vadd.f32 %v679, %v691
    %v700 = vadd.f32 %v680, %v692
    %v701 = vadd.f32 %v681, %v693
    %v702 = vadd.f32 %v682, %v694
    %v703 = vadd.f32 %v683, %v695
    %v704 = vadd.s32 %v312, 8
    %v705 = vadd.s32 %v312, 16
    %v706 = vadd.s32 %v312, 24
    %v707 = vadd.s32 %v312, 32
    %v708 = vadd.s32 %v312, 40
    %v709 = vadd.s32 %v312, 48
    %v710 = vadd.s32 %v312, 56
    %v711 = vand.u32 %v312, 31
    %v712 = vand.u32 %v704, 31
    %v713 = vand.u32 %v705, 31
    %v714 = vand.u32 %v706, 31
    %v715 = vand.u32 %v707, 31
    %v716 = vand.u32 %v708, 31
    %v717 = vand.u32 %v709, 31
    %v718 = vand.u32 %v710, 31
    %vm719 = vcmp.lt.s32.totalorder %v711, 24
    %vm720 = vcmp.lt.s32.totalorder %v712, 24
    %vm721 = vcmp.lt.s32.totalorder %v713, 24
    %vm722 = vcmp.lt.s32.totalorder %v714, 24
    %vm723 = vcmp.lt.s32.totalorder %v715, 24
    %vm724 = vcmp.lt.s32.totalorder %v716, 24
    %vm725 = vcmp.lt.s32.totalorder %v717, 24
    %vm726 = vcmp.lt.s32.totalorder %v718, 24
    %v727 = vsel %vm719, 1, 0
    %v728 = vsel %vm720, 1, 0
    %v729 = vsel %vm721, 1, 0
    %v730 = vsel %vm722, 1, 0
    %v731 = vsel %vm723, 1, 0
    %v732 = vsel %vm724, 1, 0
    %v733 = vsel %vm725, 1, 0
    %v734 = vsel %vm726, 1, 0
    %v735 = vcvt.s32.f32 %v727
    %v736 = vcvt.s32.f32 %v728
    %v737 = vcvt.s32.f32 %v729
    %v738 = vcvt.s32.f32 %v730
    %v739 = vcvt.s32.f32 %v731
    %v740 = vcvt.s32.f32 %v732
    %v741 = vcvt.s32.f32 %v733
    %v742 = vcvt.s32.f32 %v734
    %v743 = vmul.f32 %v696, %v735
    %v744 = vmul.f32 %v697, %v736
    %v745 = vmul.f32 %v698, %v737
    %v746 = vmul.f32 %v699, %v738
    %v747 = vmul.f32 %v700, %v739
    %v748 = vmul.f32 %v701, %v740
    %v749 = vmul.f32 %v702, %v741
    %v750 = vmul.f32 %v703, %v742
    %v751 = vadd.f32 %v743, %v744
    %v752 = vadd.f32 %v751, %v745
    %v753 = vadd.f32 %v752, %v746
    %v754 = vadd.f32 %v753, %v747
    %v755 = vadd.f32 %v754, %v748
    %v756 = vadd.f32 %v755, %v749
    %v757 = vadd.f32 %v756, %v750
    %v758 = vrot.slane %v757, 4
    %v759 = vadd.f32 %v757, %v758
    %v760 = vrot.slane %v759, 2
    %v761 = vadd.f32 %v759, %v760
    %v762 = vrot.slane %v761, 1
    %v763 = vadd.f32 %v761, %v762
    %v764 = vmul.f32 %v763, 0.020833334
    %v765 = vsub.f32 %v696, %v764
    %v766 = vsub.f32 %v697, %v764
    %v767 = vsub.f32 %v698, %v764
    %v768 = vsub.f32 %v699, %v764
    %v769 = vsub.f32 %v700, %v764
    %v770 = vsub.f32 %v701, %v764
    %v771 = vsub.f32 %v702, %v764
    %v772 = vsub.f32 %v703, %v764
    %v773 = vmul.f32 %v765, %v735
    %v774 = vmul.f32 %v766, %v736
    %v775 = vmul.f32 %v767, %v737
    %v776 = vmul.f32 %v768, %v738
    %v777 = vmul.f32 %v769, %v739
    %v778 = vmul.f32 %v770, %v740
    %v779 = vmul.f32 %v771, %v741
    %v780 = vmul.f32 %v772, %v742
    %v781 = vmul.f32 %v773, %v773
    %v782 = vmul.f32 %v774, %v774
    %v783 = vmul.f32 %v775, %v775
    %v784 = vmul.f32 %v776, %v776
    %v785 = vmul.f32 %v777, %v777
    %v786 = vmul.f32 %v778, %v778
    %v787 = vmul.f32 %v779, %v779
    %v788 = vmul.f32 %v780, %v780
    %v789 = vadd.f32 %v781, %v782
    %v790 = vadd.f32 %v789, %v783
    %v791 = vadd.f32 %v790, %v784
    %v792 = vadd.f32 %v791, %v785
    %v793 = vadd.f32 %v792, %v786
    %v794 = vadd.f32 %v793, %v787
    %v795 = vadd.f32 %v794, %v788
    %v796 = vrot.slane %v795, 4
    %v797 = vadd.f32 %v795, %v796
    %v798 = vrot.slane %v797, 2
    %v799 = vadd.f32 %v797, %v798
    %v800 = vrot.slane %v799, 1
    %v801 = vadd.f32 %v799, %v800
    %v802 = vmul.f32 %v801, 0.020833334
    %v803 = vld [vmem:[%s4] sm:$0x1]
    %v804 = vadd.f32 %v802, 1e-05
    %v805 = vrsqrt.pop %v804
    %v806 = vmul.f32 %v803, %v805
    %v807 = vld [vmem:[%s5] sm:$0x1]
    %v808 = vmul.f32 %v764, %v806
    %v809 = vsub.f32 %v807, %v808
    %v811 = vlaneseq
    %v812 = vshrl.u32 %v811, 7
    %v813 = vsub.s32 0, %v812
    %v814 = vrot.slane %v806, %v813
    %v816 = vmul.f32 %v696, %v814
    %v817 = vmul.f32 %v697, %v814
    %v818 = vmul.f32 %v698, %v814
    %v819 = vmul.f32 %v699, %v814
    %v820 = vmul.f32 %v700, %v814
    %v821 = vmul.f32 %v701, %v814
    %v822 = vmul.f32 %v702, %v814
    %v823 = vmul.f32 %v703, %v814
    %v825 = vlaneseq
    %v826 = vshrl.u32 %v825, 7
    %v827 = vsub.s32 0, %v826
    %v828 = vrot.slane %v809, %v827
    %v830 = vadd.f32 %v816, %v828
    %v831 = vadd.f32 %v817, %v828
    %v832 = vadd.f32 %v818, %v828
    %v833 = vadd.f32 %v819, %v828
    %v834 = vadd.f32 %v820, %v828
    %v835 = vadd.f32 %v821, %v828
    %v836 = vadd.f32 %v822, %v828
    %v837 = vadd.f32 %v823, %v828
    %v838 = vxor.u32 %v830, 2147483648
    %v839 = vxor.u32 %v831, 2147483648
    %v840 = vxor.u32 %v832, 2147483648
    %v841 = vxor.u32 %v833, 2147483648
    %v842 = vxor.u32 %v834, 2147483648
    %v843 = vxor.u32 %v835, 2147483648
    %v844 = vxor.u32 %v836, 2147483648
    %v845 = vxor.u32 %v837, 2147483648
    %v846 = vmul.f32 %v838, 1.442695
    %v847 = vpow.pop %v846
    %v848 = vmul.f32 %v839, 1.442695
    %v849 = vpow.pop %v848
    %v850 = vmul.f32 %v840, 1.442695
    %v851 = vpow.pop %v850
    %v852 = vmul.f32 %v841, 1.442695
    %v853 = vpow.pop %v852
    %v854 = vmul.f32 %v842, 1.442695
    %v855 = vpow.pop %v854
    %v856 = vmul.f32 %v843, 1.442695
    %v857 = vpow.pop %v856
    %v858 = vmul.f32 %v844, 1.442695
    %v859 = vpow.pop %v858
    %v860 = vmul.f32 %v845, 1.442695
    %v861 = vpow.pop %v860
    %v862 = vadd.f32 %v847, 1.0
    %v863 = vadd.f32 %v849, 1.0
    %v864 = vadd.f32 %v851, 1.0
    %v865 = vadd.f32 %v853, 1.0
    %v866 = vadd.f32 %v855, 1.0
    %v867 = vadd.f32 %v857, 1.0
    %v868 = vadd.f32 %v859, 1.0
    %v869 = vadd.f32 %v861, 1.0
    %v870 = vrcp.pop %v862
    %v871 = vmul.f32 1.0, %v870
    %v872 = vrcp.pop %v863
    %v873 = vmul.f32 1.0, %v872
    %v874 = vrcp.pop %v864
    %v875 = vmul.f32 1.0, %v874
    %v876 = vrcp.pop %v865
    %v877 = vmul.f32 1.0, %v876
    %v878 = vrcp.pop %v866
    %v879 = vmul.f32 1.0, %v878
    %v880 = vrcp.pop %v867
    %v881 = vmul.f32 1.0, %v880
    %v882 = vrcp.pop %v868
    %v883 = vmul.f32 1.0, %v882
    %v884 = vrcp.pop %v869
    %v885 = vmul.f32 1.0, %v884
    %v886 = vmul.f32 %v830, %v871
    %v887 = vmul.f32 %v831, %v873
    %v888 = vmul.f32 %v832, %v875
    %v889 = vmul.f32 %v833, %v877
    %v890 = vmul.f32 %v834, %v879
    %v891 = vmul.f32 %v835, %v881
    %v892 = vmul.f32 %v836, %v883
    %v893 = vmul.f32 %v837, %v885
    %v894 = vpack.c.bf16 %v887, %v886
    %v895 = vpack.c.bf16 %v889, %v888
    %v896 = vpack.c.bf16 %v891, %v890
    %v897 = vpack.c.bf16 %v893, %v892
    %v898 = vld [vmem:[#allocation4] sm:$0xf]
    %v899 = vld [vmem:[#allocation4 + $0x4] sm:$0xf]
    %v900 = vld [vmem:[#allocation4 + $0x8] sm:$0xf]
    %v901 = vld [vmem:[#allocation4 + $0xc] sm:$0xf]
    %v902 = vld [vmem:[#allocation4 + $0x10] sm:$0xf]
    %v903 = vld [vmem:[#allocation4 + $0x14] sm:$0xf]
    %v904 = vld [vmem:[#allocation4 + $0x18] sm:$0xf]
    %v905 = vld [vmem:[#allocation4 + $0x1c] sm:$0xf]
    %v906 = vld [vmem:[#allocation4 + $0x20] sm:$0xf]
    %v907 = vld [vmem:[#allocation4 + $0x24] sm:$0xf]
    %v908 = vld [vmem:[#allocation4 + $0x28] sm:$0xf]
    %v909 = vld [vmem:[#allocation4 + $0x2c] sm:$0xf]
    %v910 = vld [vmem:[#allocation4 + $0x30] sm:$0xf]
    %v911 = vld [vmem:[#allocation4 + $0x34] sm:$0xf]
    %v912 = vld [vmem:[#allocation4 + $0x38] sm:$0xf]
    %v913 = vld [vmem:[#allocation4 + $0x3c] sm:$0xf]
    %v930 = vunpack.c.l.b16 %v898
    %v931 = vunpack.c.l.b16 %v899
    %v932 = vunpack.c.l.b16 %v900
    %v933 = vunpack.c.l.b16 %v901
    %v934 = vunpack.c.l.b16 %v902
    %v935 = vunpack.c.l.b16 %v903
    %v936 = vunpack.c.l.b16 %v904
    %v937 = vunpack.c.l.b16 %v905
    %v938 = vunpack.c.l.b16 %v906
    %v939 = vunpack.c.l.b16 %v907
    %v940 = vunpack.c.l.b16 %v908
    %v941 = vunpack.c.l.b16 %v909
    %v942 = vunpack.c.l.b16 %v910
    %v943 = vunpack.c.l.b16 %v911
    %v944 = vunpack.c.l.b16 %v912
    %v945 = vunpack.c.l.b16 %v913
    %v946 = vpack.c.b16 %v931, %v930
    %v947 = vpack.c.b16 %v933, %v932
    %v948 = vpack.c.b16 %v935, %v934
    %v949 = vpack.c.b16 %v937, %v936
    %v950 = vpack.c.b16 %v939, %v938
    %v951 = vpack.c.b16 %v941, %v940
    %v952 = vpack.c.b16 %v943, %v942
    %v953 = vpack.c.b16 %v945, %v944
    %962 = vmatprep.subr.bf16.mxu0 0
    %963 = vmatpush1.bf16.msra.mxu0 %v946
    %964 = vmatprep.subr.bf16.mxu0 0
    %965 = vmatpush1.bf16.msra.mxu0 %v947
    %966 = vmatprep.subr.bf16.mxu0 0
    %967 = vmatpush1.bf16.msra.mxu0 %v948
    %968 = vmatprep.subr.bf16.mxu0 0
    %969 = vmatpush1.bf16.msra.mxu0 %v949
    %970 = vmatprep.subr.bf16.mxu0 0
    %971 = vmatpush1.bf16.msra.mxu0 %v950
    %972 = vmatprep.subr.bf16.mxu0 0
    %973 = vmatpush1.bf16.msra.mxu0 %v951
    %974 = vmatprep.subr.bf16.mxu0 0
    %975 = vmatpush1.bf16.msra.mxu0 %v952
    %976 = vmatprep.subr.bf16.mxu0 0
    %977 = vmatpush1.bf16.msra.mxu0 %v953
    %978 = vmatprep.subr.bf16.mxu0 0
    %979 = vmatpush1.bf16.msra.mxu0 0
    %980 = vmatprep.subr.bf16.mxu0 0
    %981 = vmatpush1.bf16.msra.mxu0 0
    %982 = vmatprep.subr.bf16.mxu0 0
    %983 = vmatpush1.bf16.msra.mxu0 0
    %984 = vmatprep.subr.bf16.mxu0 0
    %985 = vmatpush1.bf16.msra.mxu0 0
    %986 = vmatprep.subr.bf16.mxu0 0
    %987 = vmatpush1.bf16.msra.mxu0 0
    %988 = vmatprep.subr.bf16.mxu0 0
    %989 = vmatpush1.bf16.msra.mxu0 0
    %990 = vmatprep.subr.bf16.mxu0 0
    %991 = vmatpush1.bf16.msra.mxu0 0
    %992 = vmatprep.subr.bf16.mxu0 0
    %993 = vmatpush1.bf16.msra.mxu0 0
    %994 = vmatprep.mubr.bf16.mxu0 0
    %995 = vmatmul.mubr.bf16.gmra.mrb[0].mxu0 %v894
    %v996 = vpop.f32.mrb[0].mxu0
    %v997 = vadd.f32 0.0, %v996
    %v998 = vpop.f32.mrb[0].mxu0
    %v999 = vpop.f32.mrb[0].mxu0
    %v1000 = vadd.f32 0.0, %v999
    %v1001 = vpop.f32.mrb[0].mxu0
    %1002 = vmatprep.mubr.bf16.mxu0 0
    %1003 = vmatmul.mubr.bf16.gmra.mrb[0].mxu0 %v895
    %v1004 = vpop.f32.mrb[0].mxu0
    %v1005 = vadd.f32 0.0, %v1004
    %v1006 = vpop.f32.mrb[0].mxu0
    %v1007 = vpop.f32.mrb[0].mxu0
    %v1008 = vadd.f32 0.0, %v1007
    %v1009 = vpop.f32.mrb[0].mxu0
    %1010 = vmatprep.mubr.bf16.mxu0 0
    %1011 = vmatmul.mubr.bf16.gmra.mrb[0].mxu0 %v896
    %v1012 = vpop.f32.mrb[0].mxu0
    %v1013 = vadd.f32 0.0, %v1012
    %v1014 = vpop.f32.mrb[0].mxu0
    %v1015 = vpop.f32.mrb[0].mxu0
    %v1016 = vadd.f32 0.0, %v1015
    %v1017 = vpop.f32.mrb[0].mxu0
    %1018 = vmatprep.mubr.bf16.mxu0 0
    %1019 = vmatmul.mubr.bf16.gmra.mrb[0].mxu0 %v897
    %v1020 = vpop.f32.mrb[0].mxu0
    %v1021 = vadd.f32 0.0, %v1020
    %v1022 = vpop.f32.mrb[0].mxu0
    %v1023 = vpop.f32.mrb[0].mxu0
    %v1024 = vadd.f32 0.0, %v1023
    %v1025 = vpop.f32.mrb[0].mxu0
    %1026 = vdwg.mxu0
    %v1027 = vadd.f32 %v52, %v997
    %v1028 = vadd.f32 %v53, %v1000
    %v1029 = vadd.f32 %v54, %v1005
    %v1030 = vadd.f32 %v55, %v1008
    %v1031 = vadd.f32 %v56, %v1013
    %v1032 = vadd.f32 %v57, %v1016
    %v1033 = vadd.f32 %v58, %v1021
    %v1034 = vadd.f32 %v59, %v1024
    %1035 = vst [vmem:[%s6] sm:$0xff] %v1027
    %1036 = vst [vmem:[%s6 + $0x8] sm:$0xff] %v1028
    %1037 = vst [vmem:[%s6 + $0x10] sm:$0xff] %v1029
    %1038 = vst [vmem:[%s6 + $0x18] sm:$0xff] %v1030
    %1039 = vst [vmem:[%s6 + $0x20] sm:$0xff] %v1031
    %1040 = vst [vmem:[%s6 + $0x28] sm:$0xff] %v1032
    %1041 = vst [vmem:[%s6 + $0x30] sm:$0xff] %v1033
    %1042 = vst [vmem:[%s6 + $0x38] sm:$0xff] %v1034
    // Predicated region
    $region34: #{forward.1} parent=1 // pred_check
      _
    $region35: #{forward.1} parent=1 // pred_check_branch
      %1044 = sbr.rel (0) target = $region37
    $region36: #{forward.1} parent=1 // pred_region
      _
    $region37: #{forward.1} parent=1 // pred_fallthru
      _
    // Predicated region
    $region38: #{forward.1} parent=1 // pred_check
      _
    $region39: #{forward.1} parent=1 // pred_check_branch
      %1046 = sbr.rel (0) target = $region41
    $region40: #{forward.1} parent=1 // pred_region
      _
    $region41: #{forward.1} parent=1 // pred_fallthru
      _
    %1047 = vsyncpa [#allocation3], 1
    %1048 = vsyncpa [#allocation5], 1

</llo_original>
